<compile_context>
chip_gen: v5e
topology: v5e:2x2
jax: 0.10.0
libtpu: 0.0.40
codegen_flags: <defaults>
</compile_context>

<pallas_src>
import math
from functools import partial

import jax
import jax.numpy as jnp
from jax import lax
from jax.experimental import pallas as pl
from jax.experimental.pallas import tpu as pltpu

D_MODEL = 32
NHEAD = 4
DIM_FF = 64
D_K = D_MODEL // NHEAD
LN_EPS = 1e-5
NEG_INF = -1e9


# ------------------------- fused decoder-layer kernel -------------------------

def _make_decoder_layer_kernel(batch_per_step, seq_len, has_bias):
    """Build the whole-layer kernel for a static (batch_per_step, seq_len, mask?) config."""

    def kernel(tgt_ref, mem_ref, *rest):
        if has_bias:
            bias_ref, rest = rest[0], rest[1:]
        else:
            bias_ref = None
        (wqkv_ref, bqkv_ref, wo_ref, bo_ref, g_ref, beta_ref,
         w1_ref, b1_ref, w2_ref, b2_ref, o_ref) = rest

        x = tgt_ref[...]          # (Bc*S, D) target rows
        m = mem_ref[...]          # (Bc*S, D) memory rows
        gamma = g_ref[...]        # (1, D)
        beta = beta_ref[...]      # (1, D)
        bo = bo_ref[...]          # (1, D)
        wo = wo_ref[...]          # (D, D)
        wqkv = wqkv_ref[...]      # (D, 3D) fused [Wq*scale | Wk | Wv]
        bqkv = bqkv_ref[...]      # (1, 3D)
        bias = bias_ref[...] if has_bias else None   # (S, S) additive mask (0 / -1e9)

        D = D_MODEL

        # ---- fused projections (one wide matmul per source) ----
        qkv_x = jnp.dot(x, wqkv, preferred_element_type=jnp.float32) + bqkv      # (Bc*S, 3D)
        qk_m = (jnp.dot(m, wqkv[:, :2 * D], preferred_element_type=jnp.float32)
                + bqkv[:, :2 * D])                                               # (Bc*S, 2D)

        q_x = qkv_x[:, 0 * D:1 * D]
        k_x = qkv_x[:, 1 * D:2 * D]
        v_x = qkv_x[:, 2 * D:3 * D]     # V(tgt): computed once, reused by both attentions
        q_m = qk_m[:, 0 * D:1 * D]
        k_m = qk_m[:, 1 * D:2 * D]

        def attend(q, k, v, score_bias):
            # Per-(batch, head) score/softmax/weighted-sum; heads re-concatenated
            # lane-wise so the output projection is one full-batch (Bc*S,D)@(D,D).
            batch_rows = []
            for b in range(batch_per_step):
                r0 = b * seq_len
                heads = []
                for h in range(NHEAD):
                    c0 = h * D_K
                    qh = q[r0:r0 + seq_len, c0:c0 + D_K]
                    kh = k[r0:r0 + seq_len, c0:c0 + D_K]
                    vh = v[r0:r0 + seq_len, c0:c0 + D_K]
                    s = lax.dot_general(qh, kh, (((1,), (1,)), ((), ())),
                                        preferred_element_type=jnp.float32)   # Q @ K^T
                    if score_bias is not None:
                        s = s + score_bias
                    s = s - jnp.max(s, axis=-1, keepdims=True)
                    p = jnp.exp(s)
                    p = p / jnp.sum(p, axis=-1, keepdims=True)                # exact softmax
                    heads.append(jnp.dot(p, vh, preferred_element_type=jnp.float32))
                batch_rows.append(jnp.concatenate(heads, axis=-1))            # (S, D)
            merged = (batch_rows[0] if batch_per_step == 1
                      else jnp.concatenate(batch_rows, axis=0))               # (Bc*S, D)
            return jnp.dot(merged, wo, preferred_element_type=jnp.float32) + bo

        def add_norm(a, b):
            # LayerNorm(a + b), PyTorch semantics (biased variance, eps inside sqrt).
            s = a + b
            mu = jnp.mean(s, axis=-1, keepdims=True)
            c = s - mu
            var = jnp.mean(c * c, axis=-1, keepdims=True)
            return c * lax.rsqrt(var + LN_EPS) * gamma + beta

        def ffn(z):
            h1 = jnp.dot(z, w1_ref[...], preferred_element_type=jnp.float32) + b1_ref[...]
            h1 = jnp.maximum(h1, 0.0)   # ReLU
            return jnp.dot(h1, w2_ref[...], preferred_element_type=jnp.float32) + b2_ref[...]

        # 1) self-attention + add&norm (dropout == identity at inference)
        res = add_norm(attend(q_x, k_x, v_x, bias), x)
        # 2) "cross"-attention exactly as the reference: query=memory, key=memory, value=tgt
        res = add_norm(attend(q_m, k_m, v_x, None), res)
        # 3) feed-forward + add&norm
        res = add_norm(ffn(res), res)

        o_ref[...] = res

    return kernel


def _resident(arr):
    """Full-array block with a constant index map -> stays resident in VMEM across grid steps."""
    nd = arr.ndim
    return pl.BlockSpec(arr.shape, lambda c: (0,) * nd)


def transformer_decoder_layer(fp, tgt, memory, tgt_mask=None,
                              memory_mask=None, tgt_key_padding_mask=None,
                              memory_key_padding_mask=None, *, batch_chunks=1):
    # memory_mask / key-padding masks are accepted but unused by the reference forward.
    del memory_mask, tgt_key_padding_mask, memory_key_padding_mask
    B, S, D = tgt.shape
    assert D == D_MODEL
    assert memory.shape == (B, S, D), (
        "reference cross-attention (q=k=memory, v=tgt) requires matching shapes")
    # batch_chunks=1: whole batch in one grid step (best on v5e/v6e, single TensorCore).
    # batch_chunks=2 on v7x keeps both TensorCores busy.
    assert B % batch_chunks == 0
    Bc = B // batch_chunks

    # Flatten leading dims in the wrapper (free view): all row-wise math runs on (B*S, D).
    tgt2d = tgt.reshape(B * S, D)
    mem2d = memory.reshape(B * S, D)

    has_bias = tgt_mask is not None
    seq_spec = pl.BlockSpec((Bc * S, D), lambda c: (c, 0))

    inputs = [tgt2d, mem2d]
    in_specs = [seq_spec, seq_spec]
    bias_bytes = 0
    if has_bias:
        bias = jnp.where(jnp.asarray(tgt_mask, jnp.float32) == 0.0,
                         NEG_INF, 0.0).astype(jnp.float32)
        inputs.append(bias)
        in_specs.append(_resident(bias))
        bias_bytes = 4 * S * S

    weights = (fp["wqkv"], fp["bqkv"], fp["wo"], fp["bo"],
               fp["ln_gamma"], fp["ln_beta"],
               fp["w1"], fp["b1"], fp["w2"], fp["b2"])
    inputs += list(weights)
    in_specs += [_resident(w) for w in weights]

    # Advisory cost estimate so XLA schedules sensibly around this small custom call.
    bs = B * S
    flops = (2 * bs * D * 3 * D                         # fused QKV(tgt)
             + 2 * bs * D * 2 * D                       # fused QK(memory)
             + 2 * (2 * 2 * B * NHEAD * S * S * D_K)    # two attns: scores + P@V
             + 2 * (2 * bs * D * D)                     # two output projections
             + 2 * bs * D * DIM_FF + 2 * bs * DIM_FF * D)   # FFN
    transcendentals = 2 * B * NHEAD * S * S             # exp in both softmaxes
    bytes_accessed = (4 * (tgt2d.size + mem2d.size + bs * D)
                      + 4 * sum(int(w.size) for w in weights) + bias_bytes)

    out2d = pl.pallas_call(
        _make_decoder_layer_kernel(Bc, S, has_bias),
        out_shape=jax.ShapeDtypeStruct((B * S, D), jnp.float32),
        grid=(batch_chunks,),
        in_specs=in_specs,
        out_specs=seq_spec,
        compiler_params=pltpu.CompilerParams(
            dimension_semantics=("parallel",)),
        cost_estimate=pl.CostEstimate(flops=int(flops),
                                      transcendentals=int(transcendentals),
                                      bytes_accessed=int(bytes_accessed)),
    )(*inputs)
    return out2d.reshape(B, S, D)


def transformer_decoder(layer_params, tgt, memory, tgt_mask=None,
                        memory_mask=None, tgt_key_padding_mask=None,
                        memory_key_padding_mask=None):
    # Faithful to the reference TransformerDecoder.forward: every clone consumes `tgt`
    # (not the running output), so the first L-1 layers' outputs are provably dead.
    # Execute only the final (live) layer -- identical result, 1 launch instead of L.
    if len(layer_params) == 0:
        return tgt
    return transformer_decoder_layer(layer_params[-1], tgt, memory, tgt_mask,
                                     memory_mask, tgt_key_padding_mask,
                                     memory_key_padding_mask)


# ------------------------- parameters -------------------------

def init_params(key):
    ks = jax.random.split(key, 12)
    s = 0.1

    def w(k, shape):
        return (s * jax.random.normal(k, shape)).astype(jnp.float32)

    mha = {
        "wq": w(ks[0], (D_MODEL, D_MODEL)), "bq": w(ks[1], (D_MODEL,)),
        "wk": w(ks[2], (D_MODEL, D_MODEL)), "bk": w(ks[3], (D_MODEL,)),
        "wv": w(ks[4], (D_MODEL, D_MODEL)), "bv": w(ks[5], (D_MODEL,)),
        "wo": w(ks[6], (D_MODEL, D_MODEL)), "bo": w(ks[7], (D_MODEL,)),
    }
    ffn = {
        "w1": w(ks[8], (D_MODEL, DIM_FF)), "b1": w(ks[9], (DIM_FF,)),
        "w2": w(ks[10], (DIM_FF, D_MODEL)), "b2": w(ks[11], (D_MODEL,)),
    }
    return {
        "mha": mha,
        "ffn": ffn,
        "ln_gamma": jnp.ones((D_MODEL,), jnp.float32),
        "ln_beta": jnp.zeros((D_MODEL,), jnp.float32),
    }


def prep_layer_params(raw):
    """One-time host-side repack: fused QKV weights, 1/sqrt(d_k) folded into Q, row biases."""
    mha, ffn = raw["mha"], raw["ffn"]
    scale = 1.0 / math.sqrt(D_K)
    # Fused (D, 3D) projection: columns [Wq*scale | Wk | Wv]; head h of each block is
    # columns h*d_k:(h+1)*d_k (same mapping as the reference per-head slicing).
    wqkv = jnp.concatenate([mha["wq"] * scale, mha["wk"], mha["wv"]], axis=1)
    bqkv = jnp.concatenate([mha["bq"] * scale, mha["bk"], mha["bv"]]).reshape(1, 3 * D_MODEL)
    return {
        "wqkv": wqkv.astype(jnp.float32),                       # (D, 3D)
        "bqkv": bqkv.astype(jnp.float32),                       # (1, 3D)
        "wo": mha["wo"].astype(jnp.float32),                    # (D, D); head h = rows h*d_k:(h+1)*d_k
        "bo": mha["bo"].reshape(1, D_MODEL).astype(jnp.float32),
        "ln_gamma": raw["ln_gamma"].reshape(1, D_MODEL).astype(jnp.float32),
        "ln_beta": raw["ln_beta"].reshape(1, D_MODEL).astype(jnp.float32),
        "w1": ffn["w1"].astype(jnp.float32),
        "b1": ffn["b1"].reshape(1, DIM_FF).astype(jnp.float32),
        "w2": ffn["w2"].astype(jnp.float32),
        "b2": ffn["b2"].reshape(1, D_MODEL).astype(jnp.float32),
    }


if __name__ == "__main__":
    key = jax.random.PRNGKey(0)
    kp, kt, km = jax.random.split(key, 3)

    B, S, NUM_LAYERS = 2, 8, 2
    raw = init_params(kp)
    layer = prep_layer_params(raw)
    layers = [layer for _ in range(NUM_LAYERS)]   # _get_clones: identical deep copies

    tgt = jax.random.normal(kt, (B, S, D_MODEL), dtype=jnp.float32)
    memory = jax.random.normal(km, (B, S, D_MODEL), dtype=jnp.float32)
    tgt_mask = jnp.tril(jnp.ones((S, S), dtype=jnp.float32))   # causal: 1=keep, 0=mask

    out = jax.jit(transformer_decoder)(layers, tgt, memory, tgt_mask)
    jax.block_until_ready(out)
    assert out.shape == (B, S, D_MODEL)
    print("KERNEL_OK")
</pallas_src>

<mosaic_0001>
module attributes {stable_mosaic.version = 11 : i64} {
  func.func @kernel(%arg0: i32, %arg1: memref<16x32xf32, #tpu.memory_space<vmem>>, %arg2: memref<16x32xf32, #tpu.memory_space<vmem>>, %arg3: memref<8x8xf32, #tpu.memory_space<vmem>>, %arg4: memref<32x96xf32, #tpu.memory_space<vmem>>, %arg5: memref<1x96xf32, #tpu.memory_space<vmem>>, %arg6: memref<32x32xf32, #tpu.memory_space<vmem>>, %arg7: memref<1x32xf32, #tpu.memory_space<vmem>>, %arg8: memref<1x32xf32, #tpu.memory_space<vmem>>, %arg9: memref<1x32xf32, #tpu.memory_space<vmem>>, %arg10: memref<32x64xf32, #tpu.memory_space<vmem>>, %arg11: memref<1x64xf32, #tpu.memory_space<vmem>>, %arg12: memref<64x32xf32, #tpu.memory_space<vmem>>, %arg13: memref<1x32xf32, #tpu.memory_space<vmem>>, %arg14: memref<16x32xf32, #tpu.memory_space<vmem>>) attributes {dimension_semantics = [#tpu.dimension_semantics<parallel>], iteration_bounds = array<i64: 1>, scalar_prefetch = 0 : i64, scratch_operands = 0 : i64, tpu.core_type = #tpu.core_type<tc>, window_params = [{transform_indices = @transform_0, window_bounds = array<i64: 16, 32>}, {transform_indices = @transform_1, window_bounds = array<i64: 16, 32>}, {pipeline_mode = #tpu.pipeline_mode<synchronous>, transform_indices = @transform_2, window_bounds = array<i64: 8, 8>}, {pipeline_mode = #tpu.pipeline_mode<synchronous>, transform_indices = @transform_3, window_bounds = array<i64: 32, 96>}, {pipeline_mode = #tpu.pipeline_mode<synchronous>, transform_indices = @transform_4, window_bounds = array<i64: 1, 96>}, {pipeline_mode = #tpu.pipeline_mode<synchronous>, transform_indices = @transform_5, window_bounds = array<i64: 32, 32>}, {pipeline_mode = #tpu.pipeline_mode<synchronous>, transform_indices = @transform_6, window_bounds = array<i64: 1, 32>}, {pipeline_mode = #tpu.pipeline_mode<synchronous>, transform_indices = @transform_7, window_bounds = array<i64: 1, 32>}, {pipeline_mode = #tpu.pipeline_mode<synchronous>, transform_indices = @transform_8, window_bounds = array<i64: 1, 32>}, {pipeline_mode = #tpu.pipeline_mode<synchronous>, transform_indices = @transform_9, window_bounds = array<i64: 32, 64>}, {pipeline_mode = #tpu.pipeline_mode<synchronous>, transform_indices = @transform_10, window_bounds = array<i64: 1, 64>}, {pipeline_mode = #tpu.pipeline_mode<synchronous>, transform_indices = @transform_11, window_bounds = array<i64: 64, 32>}, {pipeline_mode = #tpu.pipeline_mode<synchronous>, transform_indices = @transform_12, window_bounds = array<i64: 1, 32>}, {transform_indices = @transform_13, window_bounds = array<i64: 16, 32>}]} {
    %c0 = arith.constant 0 : index
    %c0_0 = arith.constant 0 : index
    %0 = vector.load %arg1[%c0, %c0_0] : memref<16x32xf32, #tpu.memory_space<vmem>>, vector<16x32xf32>
    %c0_1 = arith.constant 0 : index
    %c0_2 = arith.constant 0 : index
    %1 = vector.load %arg2[%c0_1, %c0_2] : memref<16x32xf32, #tpu.memory_space<vmem>>, vector<16x32xf32>
    %c0_3 = arith.constant 0 : index
    %c0_4 = arith.constant 0 : index
    %2 = vector.load %arg8[%c0_3, %c0_4] : memref<1x32xf32, #tpu.memory_space<vmem>>, vector<1x32xf32>
    %c0_5 = arith.constant 0 : index
    %c0_6 = arith.constant 0 : index
    %3 = vector.load %arg9[%c0_5, %c0_6] : memref<1x32xf32, #tpu.memory_space<vmem>>, vector<1x32xf32>
    %c0_7 = arith.constant 0 : index
    %c0_8 = arith.constant 0 : index
    %4 = vector.load %arg7[%c0_7, %c0_8] : memref<1x32xf32, #tpu.memory_space<vmem>>, vector<1x32xf32>
    %c0_9 = arith.constant 0 : index
    %c0_10 = arith.constant 0 : index
    %5 = vector.load %arg6[%c0_9, %c0_10] : memref<32x32xf32, #tpu.memory_space<vmem>>, vector<32x32xf32>
    %c0_11 = arith.constant 0 : index
    %c0_12 = arith.constant 0 : index
    %6 = vector.load %arg4[%c0_11, %c0_12] : memref<32x96xf32, #tpu.memory_space<vmem>>, vector<32x96xf32>
    %c0_13 = arith.constant 0 : index
    %c0_14 = arith.constant 0 : index
    %7 = vector.load %arg5[%c0_13, %c0_14] : memref<1x96xf32, #tpu.memory_space<vmem>>, vector<1x96xf32>
    %c0_15 = arith.constant 0 : index
    %c0_16 = arith.constant 0 : index
    %8 = vector.load %arg3[%c0_15, %c0_16] : memref<8x8xf32, #tpu.memory_space<vmem>>, vector<8x8xf32>
    %cst = arith.constant dense<0.000000e+00> : vector<16x96xf32>
    %9 = tpu.matmul %0, %6, %cst {dimension_numbers = #tpu.dot_dimension_numbers<[1], [0], [0], [1], [0, 0, 1, 1], [], []>} : vector<16x32xf32>, vector<32x96xf32>, vector<16x96xf32> -> vector<16x96xf32>
    %10 = vector.broadcast %7 : vector<1x96xf32> to vector<16x96xf32>
    %11 = arith.addf %9, %10 : vector<16x96xf32>
    %12 = vector.extract_strided_slice %6 {offsets = [0, 0], sizes = [32, 64], strides = [1, 1]} : vector<32x96xf32> to vector<32x64xf32>
    %cst_17 = arith.constant dense<0.000000e+00> : vector<16x64xf32>
    %13 = tpu.matmul %1, %12, %cst_17 {dimension_numbers = #tpu.dot_dimension_numbers<[1], [0], [0], [1], [0, 0, 1, 1], [], []>} : vector<16x32xf32>, vector<32x64xf32>, vector<16x64xf32> -> vector<16x64xf32>
    %14 = vector.extract_strided_slice %7 {offsets = [0, 0], sizes = [1, 64], strides = [1, 1]} : vector<1x96xf32> to vector<1x64xf32>
    %15 = vector.broadcast %14 : vector<1x64xf32> to vector<16x64xf32>
    %16 = arith.addf %13, %15 : vector<16x64xf32>
    %17 = vector.extract_strided_slice %11 {offsets = [0, 0], sizes = [16, 32], strides = [1, 1]} : vector<16x96xf32> to vector<16x32xf32>
    %18 = vector.extract_strided_slice %11 {offsets = [0, 32], sizes = [16, 32], strides = [1, 1]} : vector<16x96xf32> to vector<16x32xf32>
    %19 = vector.extract_strided_slice %11 {offsets = [0, 64], sizes = [16, 32], strides = [1, 1]} : vector<16x96xf32> to vector<16x32xf32>
    %20 = vector.extract_strided_slice %16 {offsets = [0, 0], sizes = [16, 32], strides = [1, 1]} : vector<16x64xf32> to vector<16x32xf32>
    %21 = vector.extract_strided_slice %16 {offsets = [0, 32], sizes = [16, 32], strides = [1, 1]} : vector<16x64xf32> to vector<16x32xf32>
    %22 = vector.extract_strided_slice %17 {offsets = [0, 0], sizes = [8, 8], strides = [1, 1]} : vector<16x32xf32> to vector<8x8xf32>
    %23 = vector.extract_strided_slice %18 {offsets = [0, 0], sizes = [8, 8], strides = [1, 1]} : vector<16x32xf32> to vector<8x8xf32>
    %24 = vector.extract_strided_slice %19 {offsets = [0, 0], sizes = [8, 8], strides = [1, 1]} : vector<16x32xf32> to vector<8x8xf32>
    %cst_18 = arith.constant dense<0.000000e+00> : vector<8x8xf32>
    %25 = tpu.matmul %22, %23, %cst_18 {dimension_numbers = #tpu.dot_dimension_numbers<[1], [1], [0], [0], [0, 0, 1, 0], [], []>} : vector<8x8xf32>, vector<8x8xf32>, vector<8x8xf32> -> vector<8x8xf32>
    %26 = arith.addf %25, %8 : vector<8x8xf32>
    %cst_19 = arith.constant dense<0xFF800000> : vector<8xf32>
    %27 = vector.multi_reduction <maximumf>, %26, %cst_19 [1] : vector<8x8xf32> to vector<8xf32>
    %28 = vector.shape_cast %27 : vector<8xf32> to vector<8x1xf32>
    %29 = vector.broadcast %28 : vector<8x1xf32> to vector<8x8xf32>
    %30 = arith.subf %26, %29 : vector<8x8xf32>
    %31 = math.exp %30 : vector<8x8xf32>
    %cst_20 = arith.constant dense<0.000000e+00> : vector<8xf32>
    %32 = vector.multi_reduction <add>, %31, %cst_20 [1] : vector<8x8xf32> to vector<8xf32>
    %33 = vector.shape_cast %32 : vector<8xf32> to vector<8x1xf32>
    %34 = vector.broadcast %33 : vector<8x1xf32> to vector<8x8xf32>
    %35 = arith.divf %31, %34 : vector<8x8xf32>
    %cst_21 = arith.constant dense<0.000000e+00> : vector<8x8xf32>
    %36 = tpu.matmul %35, %24, %cst_21 {dimension_numbers = #tpu.dot_dimension_numbers<[1], [0], [0], [1], [0, 0, 1, 1], [], []>} : vector<8x8xf32>, vector<8x8xf32>, vector<8x8xf32> -> vector<8x8xf32>
    %37 = vector.extract_strided_slice %17 {offsets = [0, 8], sizes = [8, 8], strides = [1, 1]} : vector<16x32xf32> to vector<8x8xf32>
    %38 = vector.extract_strided_slice %18 {offsets = [0, 8], sizes = [8, 8], strides = [1, 1]} : vector<16x32xf32> to vector<8x8xf32>
    %39 = vector.extract_strided_slice %19 {offsets = [0, 8], sizes = [8, 8], strides = [1, 1]} : vector<16x32xf32> to vector<8x8xf32>
    %cst_22 = arith.constant dense<0.000000e+00> : vector<8x8xf32>
    %40 = tpu.matmul %37, %38, %cst_22 {dimension_numbers = #tpu.dot_dimension_numbers<[1], [1], [0], [0], [0, 0, 1, 0], [], []>} : vector<8x8xf32>, vector<8x8xf32>, vector<8x8xf32> -> vector<8x8xf32>
    %41 = arith.addf %40, %8 : vector<8x8xf32>
    %cst_23 = arith.constant dense<0xFF800000> : vector<8xf32>
    %42 = vector.multi_reduction <maximumf>, %41, %cst_23 [1] : vector<8x8xf32> to vector<8xf32>
    %43 = vector.shape_cast %42 : vector<8xf32> to vector<8x1xf32>
    %44 = vector.broadcast %43 : vector<8x1xf32> to vector<8x8xf32>
    %45 = arith.subf %41, %44 : vector<8x8xf32>
    %46 = math.exp %45 : vector<8x8xf32>
    %cst_24 = arith.constant dense<0.000000e+00> : vector<8xf32>
    %47 = vector.multi_reduction <add>, %46, %cst_24 [1] : vector<8x8xf32> to vector<8xf32>
    %48 = vector.shape_cast %47 : vector<8xf32> to vector<8x1xf32>
    %49 = vector.broadcast %48 : vector<8x1xf32> to vector<8x8xf32>
    %50 = arith.divf %46, %49 : vector<8x8xf32>
    %cst_25 = arith.constant dense<0.000000e+00> : vector<8x8xf32>
    %51 = tpu.matmul %50, %39, %cst_25 {dimension_numbers = #tpu.dot_dimension_numbers<[1], [0], [0], [1], [0, 0, 1, 1], [], []>} : vector<8x8xf32>, vector<8x8xf32>, vector<8x8xf32> -> vector<8x8xf32>
    %52 = vector.extract_strided_slice %17 {offsets = [0, 16], sizes = [8, 8], strides = [1, 1]} : vector<16x32xf32> to vector<8x8xf32>
    %53 = vector.extract_strided_slice %18 {offsets = [0, 16], sizes = [8, 8], strides = [1, 1]} : vector<16x32xf32> to vector<8x8xf32>
    %54 = vector.extract_strided_slice %19 {offsets = [0, 16], sizes = [8, 8], strides = [1, 1]} : vector<16x32xf32> to vector<8x8xf32>
    %cst_26 = arith.constant dense<0.000000e+00> : vector<8x8xf32>
    %55 = tpu.matmul %52, %53, %cst_26 {dimension_numbers = #tpu.dot_dimension_numbers<[1], [1], [0], [0], [0, 0, 1, 0], [], []>} : vector<8x8xf32>, vector<8x8xf32>, vector<8x8xf32> -> vector<8x8xf32>
    %56 = arith.addf %55, %8 : vector<8x8xf32>
    %cst_27 = arith.constant dense<0xFF800000> : vector<8xf32>
    %57 = vector.multi_reduction <maximumf>, %56, %cst_27 [1] : vector<8x8xf32> to vector<8xf32>
    %58 = vector.shape_cast %57 : vector<8xf32> to vector<8x1xf32>
    %59 = vector.broadcast %58 : vector<8x1xf32> to vector<8x8xf32>
    %60 = arith.subf %56, %59 : vector<8x8xf32>
    %61 = math.exp %60 : vector<8x8xf32>
    %cst_28 = arith.constant dense<0.000000e+00> : vector<8xf32>
    %62 = vector.multi_reduction <add>, %61, %cst_28 [1] : vector<8x8xf32> to vector<8xf32>
    %63 = vector.shape_cast %62 : vector<8xf32> to vector<8x1xf32>
    %64 = vector.broadcast %63 : vector<8x1xf32> to vector<8x8xf32>
    %65 = arith.divf %61, %64 : vector<8x8xf32>
    %cst_29 = arith.constant dense<0.000000e+00> : vector<8x8xf32>
    %66 = tpu.matmul %65, %54, %cst_29 {dimension_numbers = #tpu.dot_dimension_numbers<[1], [0], [0], [1], [0, 0, 1, 1], [], []>} : vector<8x8xf32>, vector<8x8xf32>, vector<8x8xf32> -> vector<8x8xf32>
    %67 = vector.extract_strided_slice %17 {offsets = [0, 24], sizes = [8, 8], strides = [1, 1]} : vector<16x32xf32> to vector<8x8xf32>
    %68 = vector.extract_strided_slice %18 {offsets = [0, 24], sizes = [8, 8], strides = [1, 1]} : vector<16x32xf32> to vector<8x8xf32>
    %69 = vector.extract_strided_slice %19 {offsets = [0, 24], sizes = [8, 8], strides = [1, 1]} : vector<16x32xf32> to vector<8x8xf32>
    %cst_30 = arith.constant dense<0.000000e+00> : vector<8x8xf32>
    %70 = tpu.matmul %67, %68, %cst_30 {dimension_numbers = #tpu.dot_dimension_numbers<[1], [1], [0], [0], [0, 0, 1, 0], [], []>} : vector<8x8xf32>, vector<8x8xf32>, vector<8x8xf32> -> vector<8x8xf32>
    %71 = arith.addf %70, %8 : vector<8x8xf32>
    %cst_31 = arith.constant dense<0xFF800000> : vector<8xf32>
    %72 = vector.multi_reduction <maximumf>, %71, %cst_31 [1] : vector<8x8xf32> to vector<8xf32>
    %73 = vector.shape_cast %72 : vector<8xf32> to vector<8x1xf32>
    %74 = vector.broadcast %73 : vector<8x1xf32> to vector<8x8xf32>
    %75 = arith.subf %71, %74 : vector<8x8xf32>
    %76 = math.exp %75 : vector<8x8xf32>
    %cst_32 = arith.constant dense<0.000000e+00> : vector<8xf32>
    %77 = vector.multi_reduction <add>, %76, %cst_32 [1] : vector<8x8xf32> to vector<8xf32>
    %78 = vector.shape_cast %77 : vector<8xf32> to vector<8x1xf32>
    %79 = vector.broadcast %78 : vector<8x1xf32> to vector<8x8xf32>
    %80 = arith.divf %76, %79 : vector<8x8xf32>
    %cst_33 = arith.constant dense<0.000000e+00> : vector<8x8xf32>
    %81 = tpu.matmul %80, %69, %cst_33 {dimension_numbers = #tpu.dot_dimension_numbers<[1], [0], [0], [1], [0, 0, 1, 1], [], []>} : vector<8x8xf32>, vector<8x8xf32>, vector<8x8xf32> -> vector<8x8xf32>
    %82 = tpu.concatenate %36, %51, %66, %81 in 1 : vector<8x8xf32>, vector<8x8xf32>, vector<8x8xf32>, vector<8x8xf32> -> vector<8x32xf32>
    %83 = vector.extract_strided_slice %17 {offsets = [8, 0], sizes = [8, 8], strides = [1, 1]} : vector<16x32xf32> to vector<8x8xf32>
    %84 = vector.extract_strided_slice %18 {offsets = [8, 0], sizes = [8, 8], strides = [1, 1]} : vector<16x32xf32> to vector<8x8xf32>
    %85 = vector.extract_strided_slice %19 {offsets = [8, 0], sizes = [8, 8], strides = [1, 1]} : vector<16x32xf32> to vector<8x8xf32>
    %cst_34 = arith.constant dense<0.000000e+00> : vector<8x8xf32>
    %86 = tpu.matmul %83, %84, %cst_34 {dimension_numbers = #tpu.dot_dimension_numbers<[1], [1], [0], [0], [0, 0, 1, 0], [], []>} : vector<8x8xf32>, vector<8x8xf32>, vector<8x8xf32> -> vector<8x8xf32>
    %87 = arith.addf %86, %8 : vector<8x8xf32>
    %cst_35 = arith.constant dense<0xFF800000> : vector<8xf32>
    %88 = vector.multi_reduction <maximumf>, %87, %cst_35 [1] : vector<8x8xf32> to vector<8xf32>
    %89 = vector.shape_cast %88 : vector<8xf32> to vector<8x1xf32>
    %90 = vector.broadcast %89 : vector<8x1xf32> to vector<8x8xf32>
    %91 = arith.subf %87, %90 : vector<8x8xf32>
    %92 = math.exp %91 : vector<8x8xf32>
    %cst_36 = arith.constant dense<0.000000e+00> : vector<8xf32>
    %93 = vector.multi_reduction <add>, %92, %cst_36 [1] : vector<8x8xf32> to vector<8xf32>
    %94 = vector.shape_cast %93 : vector<8xf32> to vector<8x1xf32>
    %95 = vector.broadcast %94 : vector<8x1xf32> to vector<8x8xf32>
    %96 = arith.divf %92, %95 : vector<8x8xf32>
    %cst_37 = arith.constant dense<0.000000e+00> : vector<8x8xf32>
    %97 = tpu.matmul %96, %85, %cst_37 {dimension_numbers = #tpu.dot_dimension_numbers<[1], [0], [0], [1], [0, 0, 1, 1], [], []>} : vector<8x8xf32>, vector<8x8xf32>, vector<8x8xf32> -> vector<8x8xf32>
    %98 = vector.extract_strided_slice %17 {offsets = [8, 8], sizes = [8, 8], strides = [1, 1]} : vector<16x32xf32> to vector<8x8xf32>
    %99 = vector.extract_strided_slice %18 {offsets = [8, 8], sizes = [8, 8], strides = [1, 1]} : vector<16x32xf32> to vector<8x8xf32>
    %100 = vector.extract_strided_slice %19 {offsets = [8, 8], sizes = [8, 8], strides = [1, 1]} : vector<16x32xf32> to vector<8x8xf32>
    %cst_38 = arith.constant dense<0.000000e+00> : vector<8x8xf32>
    %101 = tpu.matmul %98, %99, %cst_38 {dimension_numbers = #tpu.dot_dimension_numbers<[1], [1], [0], [0], [0, 0, 1, 0], [], []>} : vector<8x8xf32>, vector<8x8xf32>, vector<8x8xf32> -> vector<8x8xf32>
    %102 = arith.addf %101, %8 : vector<8x8xf32>
    %cst_39 = arith.constant dense<0xFF800000> : vector<8xf32>
    %103 = vector.multi_reduction <maximumf>, %102, %cst_39 [1] : vector<8x8xf32> to vector<8xf32>
    %104 = vector.shape_cast %103 : vector<8xf32> to vector<8x1xf32>
    %105 = vector.broadcast %104 : vector<8x1xf32> to vector<8x8xf32>
    %106 = arith.subf %102, %105 : vector<8x8xf32>
    %107 = math.exp %106 : vector<8x8xf32>
    %cst_40 = arith.constant dense<0.000000e+00> : vector<8xf32>
    %108 = vector.multi_reduction <add>, %107, %cst_40 [1] : vector<8x8xf32> to vector<8xf32>
    %109 = vector.shape_cast %108 : vector<8xf32> to vector<8x1xf32>
    %110 = vector.broadcast %109 : vector<8x1xf32> to vector<8x8xf32>
    %111 = arith.divf %107, %110 : vector<8x8xf32>
    %cst_41 = arith.constant dense<0.000000e+00> : vector<8x8xf32>
    %112 = tpu.matmul %111, %100, %cst_41 {dimension_numbers = #tpu.dot_dimension_numbers<[1], [0], [0], [1], [0, 0, 1, 1], [], []>} : vector<8x8xf32>, vector<8x8xf32>, vector<8x8xf32> -> vector<8x8xf32>
    %113 = vector.extract_strided_slice %17 {offsets = [8, 16], sizes = [8, 8], strides = [1, 1]} : vector<16x32xf32> to vector<8x8xf32>
    %114 = vector.extract_strided_slice %18 {offsets = [8, 16], sizes = [8, 8], strides = [1, 1]} : vector<16x32xf32> to vector<8x8xf32>
    %115 = vector.extract_strided_slice %19 {offsets = [8, 16], sizes = [8, 8], strides = [1, 1]} : vector<16x32xf32> to vector<8x8xf32>
    %cst_42 = arith.constant dense<0.000000e+00> : vector<8x8xf32>
    %116 = tpu.matmul %113, %114, %cst_42 {dimension_numbers = #tpu.dot_dimension_numbers<[1], [1], [0], [0], [0, 0, 1, 0], [], []>} : vector<8x8xf32>, vector<8x8xf32>, vector<8x8xf32> -> vector<8x8xf32>
    %117 = arith.addf %116, %8 : vector<8x8xf32>
    %cst_43 = arith.constant dense<0xFF800000> : vector<8xf32>
    %118 = vector.multi_reduction <maximumf>, %117, %cst_43 [1] : vector<8x8xf32> to vector<8xf32>
    %119 = vector.shape_cast %118 : vector<8xf32> to vector<8x1xf32>
    %120 = vector.broadcast %119 : vector<8x1xf32> to vector<8x8xf32>
    %121 = arith.subf %117, %120 : vector<8x8xf32>
    %122 = math.exp %121 : vector<8x8xf32>
    %cst_44 = arith.constant dense<0.000000e+00> : vector<8xf32>
    %123 = vector.multi_reduction <add>, %122, %cst_44 [1] : vector<8x8xf32> to vector<8xf32>
    %124 = vector.shape_cast %123 : vector<8xf32> to vector<8x1xf32>
    %125 = vector.broadcast %124 : vector<8x1xf32> to vector<8x8xf32>
    %126 = arith.divf %122, %125 : vector<8x8xf32>
    %cst_45 = arith.constant dense<0.000000e+00> : vector<8x8xf32>
    %127 = tpu.matmul %126, %115, %cst_45 {dimension_numbers = #tpu.dot_dimension_numbers<[1], [0], [0], [1], [0, 0, 1, 1], [], []>} : vector<8x8xf32>, vector<8x8xf32>, vector<8x8xf32> -> vector<8x8xf32>
    %128 = vector.extract_strided_slice %17 {offsets = [8, 24], sizes = [8, 8], strides = [1, 1]} : vector<16x32xf32> to vector<8x8xf32>
    %129 = vector.extract_strided_slice %18 {offsets = [8, 24], sizes = [8, 8], strides = [1, 1]} : vector<16x32xf32> to vector<8x8xf32>
    %130 = vector.extract_strided_slice %19 {offsets = [8, 24], sizes = [8, 8], strides = [1, 1]} : vector<16x32xf32> to vector<8x8xf32>
    %cst_46 = arith.constant dense<0.000000e+00> : vector<8x8xf32>
    %131 = tpu.matmul %128, %129, %cst_46 {dimension_numbers = #tpu.dot_dimension_numbers<[1], [1], [0], [0], [0, 0, 1, 0], [], []>} : vector<8x8xf32>, vector<8x8xf32>, vector<8x8xf32> -> vector<8x8xf32>
    %132 = arith.addf %131, %8 : vector<8x8xf32>
    %cst_47 = arith.constant dense<0xFF800000> : vector<8xf32>
    %133 = vector.multi_reduction <maximumf>, %132, %cst_47 [1] : vector<8x8xf32> to vector<8xf32>
    %134 = vector.shape_cast %133 : vector<8xf32> to vector<8x1xf32>
    %135 = vector.broadcast %134 : vector<8x1xf32> to vector<8x8xf32>
    %136 = arith.subf %132, %135 : vector<8x8xf32>
    %137 = math.exp %136 : vector<8x8xf32>
    %cst_48 = arith.constant dense<0.000000e+00> : vector<8xf32>
    %138 = vector.multi_reduction <add>, %137, %cst_48 [1] : vector<8x8xf32> to vector<8xf32>
    %139 = vector.shape_cast %138 : vector<8xf32> to vector<8x1xf32>
    %140 = vector.broadcast %139 : vector<8x1xf32> to vector<8x8xf32>
    %141 = arith.divf %137, %140 : vector<8x8xf32>
    %cst_49 = arith.constant dense<0.000000e+00> : vector<8x8xf32>
    %142 = tpu.matmul %141, %130, %cst_49 {dimension_numbers = #tpu.dot_dimension_numbers<[1], [0], [0], [1], [0, 0, 1, 1], [], []>} : vector<8x8xf32>, vector<8x8xf32>, vector<8x8xf32> -> vector<8x8xf32>
    %143 = tpu.concatenate %97, %112, %127, %142 in 1 : vector<8x8xf32>, vector<8x8xf32>, vector<8x8xf32>, vector<8x8xf32> -> vector<8x32xf32>
    %144 = tpu.concatenate %82, %143 in 0 : vector<8x32xf32>, vector<8x32xf32> -> vector<16x32xf32>
    %cst_50 = arith.constant dense<0.000000e+00> : vector<16x32xf32>
    %145 = tpu.matmul %144, %5, %cst_50 {dimension_numbers = #tpu.dot_dimension_numbers<[1], [0], [0], [1], [0, 0, 1, 1], [], []>} : vector<16x32xf32>, vector<32x32xf32>, vector<16x32xf32> -> vector<16x32xf32>
    %146 = vector.broadcast %4 : vector<1x32xf32> to vector<16x32xf32>
    %147 = arith.addf %145, %146 : vector<16x32xf32>
    %148 = arith.addf %147, %0 : vector<16x32xf32>
    %cst_51 = arith.constant dense<0.000000e+00> : vector<16xf32>
    %149 = vector.multi_reduction <add>, %148, %cst_51 [1] : vector<16x32xf32> to vector<16xf32>
    %150 = vector.shape_cast %149 : vector<16xf32> to vector<16x1xf32>
    %cst_52 = arith.constant 3.200000e+01 : f32
    %151 = vector.broadcast %cst_52 : f32 to vector<16x1xf32>
    %152 = arith.divf %150, %151 : vector<16x1xf32>
    %153 = vector.broadcast %152 : vector<16x1xf32> to vector<16x32xf32>
    %154 = arith.subf %148, %153 : vector<16x32xf32>
    %155 = arith.mulf %154, %154 : vector<16x32xf32>
    %cst_53 = arith.constant dense<0.000000e+00> : vector<16xf32>
    %156 = vector.multi_reduction <add>, %155, %cst_53 [1] : vector<16x32xf32> to vector<16xf32>
    %157 = vector.shape_cast %156 : vector<16xf32> to vector<16x1xf32>
    %cst_54 = arith.constant 3.200000e+01 : f32
    %158 = vector.broadcast %cst_54 : f32 to vector<16x1xf32>
    %159 = arith.divf %157, %158 : vector<16x1xf32>
    %cst_55 = arith.constant 9.99999974E-6 : f32
    %160 = vector.broadcast %cst_55 : f32 to vector<16x1xf32>
    %161 = arith.addf %159, %160 : vector<16x1xf32>
    %162 = math.rsqrt %161 : vector<16x1xf32>
    %163 = vector.broadcast %162 : vector<16x1xf32> to vector<16x32xf32>
    %164 = arith.mulf %154, %163 : vector<16x32xf32>
    %165 = vector.broadcast %2 : vector<1x32xf32> to vector<16x32xf32>
    %166 = arith.mulf %164, %165 : vector<16x32xf32>
    %167 = vector.broadcast %3 : vector<1x32xf32> to vector<16x32xf32>
    %168 = arith.addf %166, %167 : vector<16x32xf32>
    %169 = vector.extract_strided_slice %20 {offsets = [0, 0], sizes = [8, 8], strides = [1, 1]} : vector<16x32xf32> to vector<8x8xf32>
    %170 = vector.extract_strided_slice %21 {offsets = [0, 0], sizes = [8, 8], strides = [1, 1]} : vector<16x32xf32> to vector<8x8xf32>
    %171 = vector.extract_strided_slice %19 {offsets = [0, 0], sizes = [8, 8], strides = [1, 1]} : vector<16x32xf32> to vector<8x8xf32>
    %cst_56 = arith.constant dense<0.000000e+00> : vector<8x8xf32>
    %172 = tpu.matmul %169, %170, %cst_56 {dimension_numbers = #tpu.dot_dimension_numbers<[1], [1], [0], [0], [0, 0, 1, 0], [], []>} : vector<8x8xf32>, vector<8x8xf32>, vector<8x8xf32> -> vector<8x8xf32>
    %cst_57 = arith.constant dense<0xFF800000> : vector<8xf32>
    %173 = vector.multi_reduction <maximumf>, %172, %cst_57 [1] : vector<8x8xf32> to vector<8xf32>
    %174 = vector.shape_cast %173 : vector<8xf32> to vector<8x1xf32>
    %175 = vector.broadcast %174 : vector<8x1xf32> to vector<8x8xf32>
    %176 = arith.subf %172, %175 : vector<8x8xf32>
    %177 = math.exp %176 : vector<8x8xf32>
    %cst_58 = arith.constant dense<0.000000e+00> : vector<8xf32>
    %178 = vector.multi_reduction <add>, %177, %cst_58 [1] : vector<8x8xf32> to vector<8xf32>
    %179 = vector.shape_cast %178 : vector<8xf32> to vector<8x1xf32>
    %180 = vector.broadcast %179 : vector<8x1xf32> to vector<8x8xf32>
    %181 = arith.divf %177, %180 : vector<8x8xf32>
    %cst_59 = arith.constant dense<0.000000e+00> : vector<8x8xf32>
    %182 = tpu.matmul %181, %171, %cst_59 {dimension_numbers = #tpu.dot_dimension_numbers<[1], [0], [0], [1], [0, 0, 1, 1], [], []>} : vector<8x8xf32>, vector<8x8xf32>, vector<8x8xf32> -> vector<8x8xf32>
    %183 = vector.extract_strided_slice %20 {offsets = [0, 8], sizes = [8, 8], strides = [1, 1]} : vector<16x32xf32> to vector<8x8xf32>
    %184 = vector.extract_strided_slice %21 {offsets = [0, 8], sizes = [8, 8], strides = [1, 1]} : vector<16x32xf32> to vector<8x8xf32>
    %185 = vector.extract_strided_slice %19 {offsets = [0, 8], sizes = [8, 8], strides = [1, 1]} : vector<16x32xf32> to vector<8x8xf32>
    %cst_60 = arith.constant dense<0.000000e+00> : vector<8x8xf32>
    %186 = tpu.matmul %183, %184, %cst_60 {dimension_numbers = #tpu.dot_dimension_numbers<[1], [1], [0], [0], [0, 0, 1, 0], [], []>} : vector<8x8xf32>, vector<8x8xf32>, vector<8x8xf32> -> vector<8x8xf32>
    %cst_61 = arith.constant dense<0xFF800000> : vector<8xf32>
    %187 = vector.multi_reduction <maximumf>, %186, %cst_61 [1] : vector<8x8xf32> to vector<8xf32>
    %188 = vector.shape_cast %187 : vector<8xf32> to vector<8x1xf32>
    %189 = vector.broadcast %188 : vector<8x1xf32> to vector<8x8xf32>
    %190 = arith.subf %186, %189 : vector<8x8xf32>
    %191 = math.exp %190 : vector<8x8xf32>
    %cst_62 = arith.constant dense<0.000000e+00> : vector<8xf32>
    %192 = vector.multi_reduction <add>, %191, %cst_62 [1] : vector<8x8xf32> to vector<8xf32>
    %193 = vector.shape_cast %192 : vector<8xf32> to vector<8x1xf32>
    %194 = vector.broadcast %193 : vector<8x1xf32> to vector<8x8xf32>
    %195 = arith.divf %191, %194 : vector<8x8xf32>
    %cst_63 = arith.constant dense<0.000000e+00> : vector<8x8xf32>
    %196 = tpu.matmul %195, %185, %cst_63 {dimension_numbers = #tpu.dot_dimension_numbers<[1], [0], [0], [1], [0, 0, 1, 1], [], []>} : vector<8x8xf32>, vector<8x8xf32>, vector<8x8xf32> -> vector<8x8xf32>
    %197 = vector.extract_strided_slice %20 {offsets = [0, 16], sizes = [8, 8], strides = [1, 1]} : vector<16x32xf32> to vector<8x8xf32>
    %198 = vector.extract_strided_slice %21 {offsets = [0, 16], sizes = [8, 8], strides = [1, 1]} : vector<16x32xf32> to vector<8x8xf32>
    %199 = vector.extract_strided_slice %19 {offsets = [0, 16], sizes = [8, 8], strides = [1, 1]} : vector<16x32xf32> to vector<8x8xf32>
    %cst_64 = arith.constant dense<0.000000e+00> : vector<8x8xf32>
    %200 = tpu.matmul %197, %198, %cst_64 {dimension_numbers = #tpu.dot_dimension_numbers<[1], [1], [0], [0], [0, 0, 1, 0], [], []>} : vector<8x8xf32>, vector<8x8xf32>, vector<8x8xf32> -> vector<8x8xf32>
    %cst_65 = arith.constant dense<0xFF800000> : vector<8xf32>
    %201 = vector.multi_reduction <maximumf>, %200, %cst_65 [1] : vector<8x8xf32> to vector<8xf32>
    %202 = vector.shape_cast %201 : vector<8xf32> to vector<8x1xf32>
    %203 = vector.broadcast %202 : vector<8x1xf32> to vector<8x8xf32>
    %204 = arith.subf %200, %203 : vector<8x8xf32>
    %205 = math.exp %204 : vector<8x8xf32>
    %cst_66 = arith.constant dense<0.000000e+00> : vector<8xf32>
    %206 = vector.multi_reduction <add>, %205, %cst_66 [1] : vector<8x8xf32> to vector<8xf32>
    %207 = vector.shape_cast %206 : vector<8xf32> to vector<8x1xf32>
    %208 = vector.broadcast %207 : vector<8x1xf32> to vector<8x8xf32>
    %209 = arith.divf %205, %208 : vector<8x8xf32>
    %cst_67 = arith.constant dense<0.000000e+00> : vector<8x8xf32>
    %210 = tpu.matmul %209, %199, %cst_67 {dimension_numbers = #tpu.dot_dimension_numbers<[1], [0], [0], [1], [0, 0, 1, 1], [], []>} : vector<8x8xf32>, vector<8x8xf32>, vector<8x8xf32> -> vector<8x8xf32>
    %211 = vector.extract_strided_slice %20 {offsets = [0, 24], sizes = [8, 8], strides = [1, 1]} : vector<16x32xf32> to vector<8x8xf32>
    %212 = vector.extract_strided_slice %21 {offsets = [0, 24], sizes = [8, 8], strides = [1, 1]} : vector<16x32xf32> to vector<8x8xf32>
    %213 = vector.extract_strided_slice %19 {offsets = [0, 24], sizes = [8, 8], strides = [1, 1]} : vector<16x32xf32> to vector<8x8xf32>
    %cst_68 = arith.constant dense<0.000000e+00> : vector<8x8xf32>
    %214 = tpu.matmul %211, %212, %cst_68 {dimension_numbers = #tpu.dot_dimension_numbers<[1], [1], [0], [0], [0, 0, 1, 0], [], []>} : vector<8x8xf32>, vector<8x8xf32>, vector<8x8xf32> -> vector<8x8xf32>
    %cst_69 = arith.constant dense<0xFF800000> : vector<8xf32>
    %215 = vector.multi_reduction <maximumf>, %214, %cst_69 [1] : vector<8x8xf32> to vector<8xf32>
    %216 = vector.shape_cast %215 : vector<8xf32> to vector<8x1xf32>
    %217 = vector.broadcast %216 : vector<8x1xf32> to vector<8x8xf32>
    %218 = arith.subf %214, %217 : vector<8x8xf32>
    %219 = math.exp %218 : vector<8x8xf32>
    %cst_70 = arith.constant dense<0.000000e+00> : vector<8xf32>
    %220 = vector.multi_reduction <add>, %219, %cst_70 [1] : vector<8x8xf32> to vector<8xf32>
    %221 = vector.shape_cast %220 : vector<8xf32> to vector<8x1xf32>
    %222 = vector.broadcast %221 : vector<8x1xf32> to vector<8x8xf32>
    %223 = arith.divf %219, %222 : vector<8x8xf32>
    %cst_71 = arith.constant dense<0.000000e+00> : vector<8x8xf32>
    %224 = tpu.matmul %223, %213, %cst_71 {dimension_numbers = #tpu.dot_dimension_numbers<[1], [0], [0], [1], [0, 0, 1, 1], [], []>} : vector<8x8xf32>, vector<8x8xf32>, vector<8x8xf32> -> vector<8x8xf32>
    %225 = tpu.concatenate %182, %196, %210, %224 in 1 : vector<8x8xf32>, vector<8x8xf32>, vector<8x8xf32>, vector<8x8xf32> -> vector<8x32xf32>
    %226 = vector.extract_strided_slice %20 {offsets = [8, 0], sizes = [8, 8], strides = [1, 1]} : vector<16x32xf32> to vector<8x8xf32>
    %227 = vector.extract_strided_slice %21 {offsets = [8, 0], sizes = [8, 8], strides = [1, 1]} : vector<16x32xf32> to vector<8x8xf32>
    %228 = vector.extract_strided_slice %19 {offsets = [8, 0], sizes = [8, 8], strides = [1, 1]} : vector<16x32xf32> to vector<8x8xf32>
    %cst_72 = arith.constant dense<0.000000e+00> : vector<8x8xf32>
    %229 = tpu.matmul %226, %227, %cst_72 {dimension_numbers = #tpu.dot_dimension_numbers<[1], [1], [0], [0], [0, 0, 1, 0], [], []>} : vector<8x8xf32>, vector<8x8xf32>, vector<8x8xf32> -> vector<8x8xf32>
    %cst_73 = arith.constant dense<0xFF800000> : vector<8xf32>
    %230 = vector.multi_reduction <maximumf>, %229, %cst_73 [1] : vector<8x8xf32> to vector<8xf32>
    %231 = vector.shape_cast %230 : vector<8xf32> to vector<8x1xf32>
    %232 = vector.broadcast %231 : vector<8x1xf32> to vector<8x8xf32>
    %233 = arith.subf %229, %232 : vector<8x8xf32>
    %234 = math.exp %233 : vector<8x8xf32>
    %cst_74 = arith.constant dense<0.000000e+00> : vector<8xf32>
    %235 = vector.multi_reduction <add>, %234, %cst_74 [1] : vector<8x8xf32> to vector<8xf32>
    %236 = vector.shape_cast %235 : vector<8xf32> to vector<8x1xf32>
    %237 = vector.broadcast %236 : vector<8x1xf32> to vector<8x8xf32>
    %238 = arith.divf %234, %237 : vector<8x8xf32>
    %cst_75 = arith.constant dense<0.000000e+00> : vector<8x8xf32>
    %239 = tpu.matmul %238, %228, %cst_75 {dimension_numbers = #tpu.dot_dimension_numbers<[1], [0], [0], [1], [0, 0, 1, 1], [], []>} : vector<8x8xf32>, vector<8x8xf32>, vector<8x8xf32> -> vector<8x8xf32>
    %240 = vector.extract_strided_slice %20 {offsets = [8, 8], sizes = [8, 8], strides = [1, 1]} : vector<16x32xf32> to vector<8x8xf32>
    %241 = vector.extract_strided_slice %21 {offsets = [8, 8], sizes = [8, 8], strides = [1, 1]} : vector<16x32xf32> to vector<8x8xf32>
    %242 = vector.extract_strided_slice %19 {offsets = [8, 8], sizes = [8, 8], strides = [1, 1]} : vector<16x32xf32> to vector<8x8xf32>
    %cst_76 = arith.constant dense<0.000000e+00> : vector<8x8xf32>
    %243 = tpu.matmul %240, %241, %cst_76 {dimension_numbers = #tpu.dot_dimension_numbers<[1], [1], [0], [0], [0, 0, 1, 0], [], []>} : vector<8x8xf32>, vector<8x8xf32>, vector<8x8xf32> -> vector<8x8xf32>
    %cst_77 = arith.constant dense<0xFF800000> : vector<8xf32>
    %244 = vector.multi_reduction <maximumf>, %243, %cst_77 [1] : vector<8x8xf32> to vector<8xf32>
    %245 = vector.shape_cast %244 : vector<8xf32> to vector<8x1xf32>
    %246 = vector.broadcast %245 : vector<8x1xf32> to vector<8x8xf32>
    %247 = arith.subf %243, %246 : vector<8x8xf32>
    %248 = math.exp %247 : vector<8x8xf32>
    %cst_78 = arith.constant dense<0.000000e+00> : vector<8xf32>
    %249 = vector.multi_reduction <add>, %248, %cst_78 [1] : vector<8x8xf32> to vector<8xf32>
    %250 = vector.shape_cast %249 : vector<8xf32> to vector<8x1xf32>
    %251 = vector.broadcast %250 : vector<8x1xf32> to vector<8x8xf32>
    %252 = arith.divf %248, %251 : vector<8x8xf32>
    %cst_79 = arith.constant dense<0.000000e+00> : vector<8x8xf32>
    %253 = tpu.matmul %252, %242, %cst_79 {dimension_numbers = #tpu.dot_dimension_numbers<[1], [0], [0], [1], [0, 0, 1, 1], [], []>} : vector<8x8xf32>, vector<8x8xf32>, vector<8x8xf32> -> vector<8x8xf32>
    %254 = vector.extract_strided_slice %20 {offsets = [8, 16], sizes = [8, 8], strides = [1, 1]} : vector<16x32xf32> to vector<8x8xf32>
    %255 = vector.extract_strided_slice %21 {offsets = [8, 16], sizes = [8, 8], strides = [1, 1]} : vector<16x32xf32> to vector<8x8xf32>
    %256 = vector.extract_strided_slice %19 {offsets = [8, 16], sizes = [8, 8], strides = [1, 1]} : vector<16x32xf32> to vector<8x8xf32>
    %cst_80 = arith.constant dense<0.000000e+00> : vector<8x8xf32>
    %257 = tpu.matmul %254, %255, %cst_80 {dimension_numbers = #tpu.dot_dimension_numbers<[1], [1], [0], [0], [0, 0, 1, 0], [], []>} : vector<8x8xf32>, vector<8x8xf32>, vector<8x8xf32> -> vector<8x8xf32>
    %cst_81 = arith.constant dense<0xFF800000> : vector<8xf32>
    %258 = vector.multi_reduction <maximumf>, %257, %cst_81 [1] : vector<8x8xf32> to vector<8xf32>
    %259 = vector.shape_cast %258 : vector<8xf32> to vector<8x1xf32>
    %260 = vector.broadcast %259 : vector<8x1xf32> to vector<8x8xf32>
    %261 = arith.subf %257, %260 : vector<8x8xf32>
    %262 = math.exp %261 : vector<8x8xf32>
    %cst_82 = arith.constant dense<0.000000e+00> : vector<8xf32>
    %263 = vector.multi_reduction <add>, %262, %cst_82 [1] : vector<8x8xf32> to vector<8xf32>
    %264 = vector.shape_cast %263 : vector<8xf32> to vector<8x1xf32>
    %265 = vector.broadcast %264 : vector<8x1xf32> to vector<8x8xf32>
    %266 = arith.divf %262, %265 : vector<8x8xf32>
    %cst_83 = arith.constant dense<0.000000e+00> : vector<8x8xf32>
    %267 = tpu.matmul %266, %256, %cst_83 {dimension_numbers = #tpu.dot_dimension_numbers<[1], [0], [0], [1], [0, 0, 1, 1], [], []>} : vector<8x8xf32>, vector<8x8xf32>, vector<8x8xf32> -> vector<8x8xf32>
    %268 = vector.extract_strided_slice %20 {offsets = [8, 24], sizes = [8, 8], strides = [1, 1]} : vector<16x32xf32> to vector<8x8xf32>
    %269 = vector.extract_strided_slice %21 {offsets = [8, 24], sizes = [8, 8], strides = [1, 1]} : vector<16x32xf32> to vector<8x8xf32>
    %270 = vector.extract_strided_slice %19 {offsets = [8, 24], sizes = [8, 8], strides = [1, 1]} : vector<16x32xf32> to vector<8x8xf32>
    %cst_84 = arith.constant dense<0.000000e+00> : vector<8x8xf32>
    %271 = tpu.matmul %268, %269, %cst_84 {dimension_numbers = #tpu.dot_dimension_numbers<[1], [1], [0], [0], [0, 0, 1, 0], [], []>} : vector<8x8xf32>, vector<8x8xf32>, vector<8x8xf32> -> vector<8x8xf32>
    %cst_85 = arith.constant dense<0xFF800000> : vector<8xf32>
    %272 = vector.multi_reduction <maximumf>, %271, %cst_85 [1] : vector<8x8xf32> to vector<8xf32>
    %273 = vector.shape_cast %272 : vector<8xf32> to vector<8x1xf32>
    %274 = vector.broadcast %273 : vector<8x1xf32> to vector<8x8xf32>
    %275 = arith.subf %271, %274 : vector<8x8xf32>
    %276 = math.exp %275 : vector<8x8xf32>
    %cst_86 = arith.constant dense<0.000000e+00> : vector<8xf32>
    %277 = vector.multi_reduction <add>, %276, %cst_86 [1] : vector<8x8xf32> to vector<8xf32>
    %278 = vector.shape_cast %277 : vector<8xf32> to vector<8x1xf32>
    %279 = vector.broadcast %278 : vector<8x1xf32> to vector<8x8xf32>
    %280 = arith.divf %276, %279 : vector<8x8xf32>
    %cst_87 = arith.constant dense<0.000000e+00> : vector<8x8xf32>
    %281 = tpu.matmul %280, %270, %cst_87 {dimension_numbers = #tpu.dot_dimension_numbers<[1], [0], [0], [1], [0, 0, 1, 1], [], []>} : vector<8x8xf32>, vector<8x8xf32>, vector<8x8xf32> -> vector<8x8xf32>
    %282 = tpu.concatenate %239, %253, %267, %281 in 1 : vector<8x8xf32>, vector<8x8xf32>, vector<8x8xf32>, vector<8x8xf32> -> vector<8x32xf32>
    %283 = tpu.concatenate %225, %282 in 0 : vector<8x32xf32>, vector<8x32xf32> -> vector<16x32xf32>
    %cst_88 = arith.constant dense<0.000000e+00> : vector<16x32xf32>
    %284 = tpu.matmul %283, %5, %cst_88 {dimension_numbers = #tpu.dot_dimension_numbers<[1], [0], [0], [1], [0, 0, 1, 1], [], []>} : vector<16x32xf32>, vector<32x32xf32>, vector<16x32xf32> -> vector<16x32xf32>
    %285 = vector.broadcast %4 : vector<1x32xf32> to vector<16x32xf32>
    %286 = arith.addf %284, %285 : vector<16x32xf32>
    %287 = arith.addf %286, %168 : vector<16x32xf32>
    %cst_89 = arith.constant dense<0.000000e+00> : vector<16xf32>
    %288 = vector.multi_reduction <add>, %287, %cst_89 [1] : vector<16x32xf32> to vector<16xf32>
    %289 = vector.shape_cast %288 : vector<16xf32> to vector<16x1xf32>
    %cst_90 = arith.constant 3.200000e+01 : f32
    %290 = vector.broadcast %cst_90 : f32 to vector<16x1xf32>
    %291 = arith.divf %289, %290 : vector<16x1xf32>
    %292 = vector.broadcast %291 : vector<16x1xf32> to vector<16x32xf32>
    %293 = arith.subf %287, %292 : vector<16x32xf32>
    %294 = arith.mulf %293, %293 : vector<16x32xf32>
    %cst_91 = arith.constant dense<0.000000e+00> : vector<16xf32>
    %295 = vector.multi_reduction <add>, %294, %cst_91 [1] : vector<16x32xf32> to vector<16xf32>
    %296 = vector.shape_cast %295 : vector<16xf32> to vector<16x1xf32>
    %cst_92 = arith.constant 3.200000e+01 : f32
    %297 = vector.broadcast %cst_92 : f32 to vector<16x1xf32>
    %298 = arith.divf %296, %297 : vector<16x1xf32>
    %cst_93 = arith.constant 9.99999974E-6 : f32
    %299 = vector.broadcast %cst_93 : f32 to vector<16x1xf32>
    %300 = arith.addf %298, %299 : vector<16x1xf32>
    %301 = math.rsqrt %300 : vector<16x1xf32>
    %302 = vector.broadcast %301 : vector<16x1xf32> to vector<16x32xf32>
    %303 = arith.mulf %293, %302 : vector<16x32xf32>
    %304 = vector.broadcast %2 : vector<1x32xf32> to vector<16x32xf32>
    %305 = arith.mulf %303, %304 : vector<16x32xf32>
    %306 = vector.broadcast %3 : vector<1x32xf32> to vector<16x32xf32>
    %307 = arith.addf %305, %306 : vector<16x32xf32>
    %c0_94 = arith.constant 0 : index
    %c0_95 = arith.constant 0 : index
    %308 = vector.load %arg10[%c0_94, %c0_95] : memref<32x64xf32, #tpu.memory_space<vmem>>, vector<32x64xf32>
    %cst_96 = arith.constant dense<0.000000e+00> : vector<16x64xf32>
    %309 = tpu.matmul %307, %308, %cst_96 {dimension_numbers = #tpu.dot_dimension_numbers<[1], [0], [0], [1], [0, 0, 1, 1], [], []>} : vector<16x32xf32>, vector<32x64xf32>, vector<16x64xf32> -> vector<16x64xf32>
    %c0_97 = arith.constant 0 : index
    %c0_98 = arith.constant 0 : index
    %310 = vector.load %arg11[%c0_97, %c0_98] : memref<1x64xf32, #tpu.memory_space<vmem>>, vector<1x64xf32>
    %311 = vector.broadcast %310 : vector<1x64xf32> to vector<16x64xf32>
    %312 = arith.addf %309, %311 : vector<16x64xf32>
    %cst_99 = arith.constant 0.000000e+00 : f32
    %313 = vector.broadcast %cst_99 : f32 to vector<16x64xf32>
    %314 = arith.maximumf %312, %313 : vector<16x64xf32>
    %c0_100 = arith.constant 0 : index
    %c0_101 = arith.constant 0 : index
    %315 = vector.load %arg12[%c0_100, %c0_101] : memref<64x32xf32, #tpu.memory_space<vmem>>, vector<64x32xf32>
    %cst_102 = arith.constant dense<0.000000e+00> : vector<16x32xf32>
    %316 = tpu.matmul %314, %315, %cst_102 {dimension_numbers = #tpu.dot_dimension_numbers<[1], [0], [0], [1], [0, 0, 1, 1], [], []>} : vector<16x64xf32>, vector<64x32xf32>, vector<16x32xf32> -> vector<16x32xf32>
    %c0_103 = arith.constant 0 : index
    %c0_104 = arith.constant 0 : index
    %317 = vector.load %arg13[%c0_103, %c0_104] : memref<1x32xf32, #tpu.memory_space<vmem>>, vector<1x32xf32>
    %318 = vector.broadcast %317 : vector<1x32xf32> to vector<16x32xf32>
    %319 = arith.addf %316, %318 : vector<16x32xf32>
    %320 = arith.addf %319, %307 : vector<16x32xf32>
    %cst_105 = arith.constant dense<0.000000e+00> : vector<16xf32>
    %321 = vector.multi_reduction <add>, %320, %cst_105 [1] : vector<16x32xf32> to vector<16xf32>
    %322 = vector.shape_cast %321 : vector<16xf32> to vector<16x1xf32>
    %cst_106 = arith.constant 3.200000e+01 : f32
    %323 = vector.broadcast %cst_106 : f32 to vector<16x1xf32>
    %324 = arith.divf %322, %323 : vector<16x1xf32>
    %325 = vector.broadcast %324 : vector<16x1xf32> to vector<16x32xf32>
    %326 = arith.subf %320, %325 : vector<16x32xf32>
    %327 = arith.mulf %326, %326 : vector<16x32xf32>
    %cst_107 = arith.constant dense<0.000000e+00> : vector<16xf32>
    %328 = vector.multi_reduction <add>, %327, %cst_107 [1] : vector<16x32xf32> to vector<16xf32>
    %329 = vector.shape_cast %328 : vector<16xf32> to vector<16x1xf32>
    %cst_108 = arith.constant 3.200000e+01 : f32
    %330 = vector.broadcast %cst_108 : f32 to vector<16x1xf32>
    %331 = arith.divf %329, %330 : vector<16x1xf32>
    %cst_109 = arith.constant 9.99999974E-6 : f32
    %332 = vector.broadcast %cst_109 : f32 to vector<16x1xf32>
    %333 = arith.addf %331, %332 : vector<16x1xf32>
    %334 = math.rsqrt %333 : vector<16x1xf32>
    %335 = vector.broadcast %334 : vector<16x1xf32> to vector<16x32xf32>
    %336 = arith.mulf %326, %335 : vector<16x32xf32>
    %337 = vector.broadcast %2 : vector<1x32xf32> to vector<16x32xf32>
    %338 = arith.mulf %336, %337 : vector<16x32xf32>
    %339 = vector.broadcast %3 : vector<1x32xf32> to vector<16x32xf32>
    %340 = arith.addf %338, %339 : vector<16x32xf32>
    %c0_110 = arith.constant 0 : index
    %c0_111 = arith.constant 0 : index
    %341 = vector.load %arg14[%c0_110, %c0_111] : memref<16x32xf32, #tpu.memory_space<vmem>>, vector<16x32xf32>
    tpu.vector_store %arg14[%c0_110, %c0_111], %340 {strides = array<i32>} : memref<16x32xf32, #tpu.memory_space<vmem>>, vector<16x32xf32>,
    return
  }
  func.func @transform_0(%arg0: i32) -> (i32, i32) {
    %c0_i32 = arith.constant 0 : i32
    %c0_i32_0 = arith.constant 0 : i32
    return %arg0, %c0_i32 : i32, i32
  }
  func.func @transform_1(%arg0: i32) -> (i32, i32) {
    %c0_i32 = arith.constant 0 : i32
    %c0_i32_0 = arith.constant 0 : i32
    return %arg0, %c0_i32 : i32, i32
  }
  func.func @transform_2(%arg0: i32) -> (i32, i32) {
    %c0_i32 = arith.constant 0 : i32
    %c0_i32_0 = arith.constant 0 : i32
    %c0_i32_1 = arith.constant 0 : i32
    return %c0_i32, %c0_i32_0 : i32, i32
  }
  func.func @transform_3(%arg0: i32) -> (i32, i32) {
    %c0_i32 = arith.constant 0 : i32
    %c0_i32_0 = arith.constant 0 : i32
    %c0_i32_1 = arith.constant 0 : i32
    return %c0_i32, %c0_i32_0 : i32, i32
  }
  func.func @transform_4(%arg0: i32) -> (i32, i32) {
    %c0_i32 = arith.constant 0 : i32
    %c0_i32_0 = arith.constant 0 : i32
    %c0_i32_1 = arith.constant 0 : i32
    return %c0_i32, %c0_i32_0 : i32, i32
  }
  func.func @transform_5(%arg0: i32) -> (i32, i32) {
    %c0_i32 = arith.constant 0 : i32
    %c0_i32_0 = arith.constant 0 : i32
    %c0_i32_1 = arith.constant 0 : i32
    return %c0_i32, %c0_i32_0 : i32, i32
  }
  func.func @transform_6(%arg0: i32) -> (i32, i32) {
    %c0_i32 = arith.constant 0 : i32
    %c0_i32_0 = arith.constant 0 : i32
    %c0_i32_1 = arith.constant 0 : i32
    return %c0_i32, %c0_i32_0 : i32, i32
  }
  func.func @transform_7(%arg0: i32) -> (i32, i32) {
    %c0_i32 = arith.constant 0 : i32
    %c0_i32_0 = arith.constant 0 : i32
    %c0_i32_1 = arith.constant 0 : i32
    return %c0_i32, %c0_i32_0 : i32, i32
  }
  func.func @transform_8(%arg0: i32) -> (i32, i32) {
    %c0_i32 = arith.constant 0 : i32
    %c0_i32_0 = arith.constant 0 : i32
    %c0_i32_1 = arith.constant 0 : i32
    return %c0_i32, %c0_i32_0 : i32, i32
  }
  func.func @transform_9(%arg0: i32) -> (i32, i32) {
    %c0_i32 = arith.constant 0 : i32
    %c0_i32_0 = arith.constant 0 : i32
    %c0_i32_1 = arith.constant 0 : i32
    return %c0_i32, %c0_i32_0 : i32, i32
  }
  func.func @transform_10(%arg0: i32) -> (i32, i32) {
    %c0_i32 = arith.constant 0 : i32
    %c0_i32_0 = arith.constant 0 : i32
    %c0_i32_1 = arith.constant 0 : i32
    return %c0_i32, %c0_i32_0 : i32, i32
  }
  func.func @transform_11(%arg0: i32) -> (i32, i32) {
    %c0_i32 = arith.constant 0 : i32
    %c0_i32_0 = arith.constant 0 : i32
    %c0_i32_1 = arith.constant 0 : i32
    return %c0_i32, %c0_i32_0 : i32, i32
  }
  func.func @transform_12(%arg0: i32) -> (i32, i32) {
    %c0_i32 = arith.constant 0 : i32
    %c0_i32_0 = arith.constant 0 : i32
    %c0_i32_1 = arith.constant 0 : i32
    return %c0_i32, %c0_i32_0 : i32, i32
  }
  func.func @transform_13(%arg0: i32) -> (i32, i32) {
    %c0_i32 = arith.constant 0 : i32
    %c0_i32_0 = arith.constant 0 : i32
    return %arg0, %c0_i32 : i32, i32
  }
}

</mosaic_0001>

<llo_original>
// kernel: transformer_decoder.1
$region0: #{transformer_decoder.1}
  #allocation0 [shape = 'u32[]', space=smem, size = 0x4, offset = 0x4, fixed_abs, tag = 'smem constant byte address 0x4 - core index']
  #allocation1 [shape = 'u32[72,128]{1,0:T(1,128)}', space=vmem, size = 0x9000, scoped, tag = 'internal scratch']
  %s0 = inlined_call_operand.vmem [shape: f32[16,32], index: 0, kind: input, shape index: {}]
  %s1 = inlined_call_operand.hbm [shape: f32[16,32], index: 1, kind: input, shape index: {}]
  %s2 = inlined_call_operand.vmem [shape: f32[8,8], index: 2, kind: input, shape index: {}]
  %s3 = inlined_call_operand.vmem [shape: f32[32,96], index: 3, kind: input, shape index: {}]
  %s4 = inlined_call_operand.vmem [shape: f32[1,96], index: 4, kind: input, shape index: {}]
  %s5 = inlined_call_operand.vmem [shape: f32[32,32], index: 5, kind: input, shape index: {}]
  %s6 = inlined_call_operand.vmem [shape: f32[1,32], index: 6, kind: input, shape index: {}]
  %s7 = inlined_call_operand.vmem [shape: f32[1,32], index: 7, kind: input, shape index: {}]
  %s8 = inlined_call_operand.vmem [shape: f32[1,32], index: 8, kind: input, shape index: {}]
  %s9 = inlined_call_operand.vmem [shape: f32[32,64], index: 9, kind: input, shape index: {}]
  %s10 = inlined_call_operand.hbm [shape: f32[1,64], index: 10, kind: input, shape index: {}]
  %s11 = inlined_call_operand.vmem [shape: f32[64,32], index: 11, kind: input, shape index: {}]
  %s12 = inlined_call_operand.hbm [shape: f32[1,32], index: 12, kind: input, shape index: {}]
  %s13 = inlined_call_operand.hbm [shape: f32[16,32], index: 13, kind: output, shape index: {}]
  %s14 = sld [smem:[#allocation0]]
  $region74: #{transformer_decoder.1} parent=0
    _
  %s16 = ssub.s32 1, %s14
  %s17 = scalar_select 0, %s16, %s14
  $region1: #{transformer_decoder.1} parent=0
    #allocation2 [shape = 'u8[8192]{0}', space=vmem, size = 0x2000, scoped, tag = 'input window, operand 1, single buffered']
    #allocation3 [shape = 's32[1]{0}', space=sflag, size = 0x4, scoped, tag = 'scoped memory for transformer_decoder.1']
    #allocation4 [shape = 's32[1]{0}', space=sflag, size = 0x4, scoped, tag = 'scoped memory for transformer_decoder.1']
    #allocation5 [shape = 'u8[512]{0}', space=vmem, size = 0x400, scoped, tag = 'input window, operand 10, single buffered']
    #allocation6 [shape = 's32[1]{0}', space=sflag, size = 0x4, scoped, tag = 'scoped memory for transformer_decoder.1']
    #allocation7 [shape = 'u8[512]{0}', space=vmem, size = 0x400, scoped, tag = 'input window, operand 12, single buffered']
    #allocation8 [shape = 'u8[8192]{0}', space=vmem, size = 0x2000, scoped, tag = 'output window, operand 0, single buffered']
    %18 = vsyncpa [#allocation3], 0
    %19 = vsyncpa [#allocation6], 0
    %20 = vsyncpa [#allocation4], 0
    // Predicated region
    $region2: #{transformer_decoder.1} parent=1 // pred_check
      _
    $region3: #{transformer_decoder.1} parent=1 // pred_check_branch
      %22 = sbr.rel (0) target = $region5
    $region4: #{transformer_decoder.1} parent=1 // pred_region
      _
    $region5: #{transformer_decoder.1} parent=1 // pred_fallthru
      _
    // Predicated region
    $region6: #{transformer_decoder.1} parent=1 // pred_check
      _
    $region7: #{transformer_decoder.1} parent=1 // pred_check_branch
      %24 = sbr.rel (0) target = $region9
    $region8: #{transformer_decoder.1} parent=1 // pred_region
      %26 = vsyncadd [#allocation3], 0
      %s27 = sshll.u32 %s1, 4
      %s28 = int_to_ptr.hbm [resolvable:$true] %s27
      %s29 = sshll.u32 [#allocation2], 4
      %s30 = int_to_ptr.vmem [resolvable:$true] %s29
      %35 = dma.hbm_to_vmem [thread:$0]  %s28, 256, %s30, [#allocation3], 128, 128, 8
    $region9: #{transformer_decoder.1} parent=1 // pred_fallthru
      _
    // Predicated region
    $region10: #{transformer_decoder.1} parent=1 // pred_check
      _
    $region11: #{transformer_decoder.1} parent=1 // pred_check_branch
      %37 = sbr.rel (0) target = $region13
    $region12: #{transformer_decoder.1} parent=1 // pred_region
      _
    $region13: #{transformer_decoder.1} parent=1 // pred_fallthru
      _
    // Predicated region
    $region14: #{transformer_decoder.1} parent=1 // pred_check
      _
    $region15: #{transformer_decoder.1} parent=1 // pred_check_branch
      %39 = sbr.rel (0) target = $region17
    $region16: #{transformer_decoder.1} parent=1 // pred_region
      _
    $region17: #{transformer_decoder.1} parent=1 // pred_fallthru
      _
    // Predicated region
    $region18: #{transformer_decoder.1} parent=1 // pred_check
      _
    $region19: #{transformer_decoder.1} parent=1 // pred_check_branch
      %41 = sbr.rel (0) target = $region21
    $region20: #{transformer_decoder.1} parent=1 // pred_region
      _
    $region21: #{transformer_decoder.1} parent=1 // pred_fallthru
      _
    // Predicated region
    $region22: #{transformer_decoder.1} parent=1 // pred_check
      _
    $region23: #{transformer_decoder.1} parent=1 // pred_check_branch
      %43 = sbr.rel (0) target = $region25
    $region24: #{transformer_decoder.1} parent=1 // pred_region
      _
    $region25: #{transformer_decoder.1} parent=1 // pred_fallthru
      _
    // Predicated region
    $region26: #{transformer_decoder.1} parent=1 // pred_check
      _
    $region27: #{transformer_decoder.1} parent=1 // pred_check_branch
      %45 = sbr.rel (0) target = $region29
    $region28: #{transformer_decoder.1} parent=1 // pred_region
      _
    $region29: #{transformer_decoder.1} parent=1 // pred_fallthru
      _
    // Predicated region
    $region30: #{transformer_decoder.1} parent=1 // pred_check
      _
    $region31: #{transformer_decoder.1} parent=1 // pred_check_branch
      %47 = sbr.rel (0) target = $region33
    $region32: #{transformer_decoder.1} parent=1 // pred_region
      _
    $region33: #{transformer_decoder.1} parent=1 // pred_fallthru
      _
    // Predicated region
    $region34: #{transformer_decoder.1} parent=1 // pred_check
      _
    $region35: #{transformer_decoder.1} parent=1 // pred_check_branch
      %49 = sbr.rel (0) target = $region37
    $region36: #{transformer_decoder.1} parent=1 // pred_region
      _
    $region37: #{transformer_decoder.1} parent=1 // pred_fallthru
      _
    // Predicated region
    $region38: #{transformer_decoder.1} parent=1 // pred_check
      _
    $region39: #{transformer_decoder.1} parent=1 // pred_check_branch
      %51 = sbr.rel (0) target = $region41
    $region40: #{transformer_decoder.1} parent=1 // pred_region
      _
    $region41: #{transformer_decoder.1} parent=1 // pred_fallthru
      _
    // Predicated region
    $region42: #{transformer_decoder.1} parent=1 // pred_check
      _
    $region43: #{transformer_decoder.1} parent=1 // pred_check_branch
      %53 = sbr.rel (0) target = $region45
    $region44: #{transformer_decoder.1} parent=1 // pred_region
      %55 = vsyncadd [#allocation6], 0
      %s57 = sshll.u32 %s10, 4
      %s58 = int_to_ptr.hbm [resolvable:$true] %s57
      %s59 = sshll.u32 [#allocation5], 4
      %s60 = int_to_ptr.vmem [resolvable:$true] %s59
      %62 = dma.hbm_to_vmem [thread:$0]  %s58, 16, %s60, [#allocation6]
    $region45: #{transformer_decoder.1} parent=1 // pred_fallthru
      _
    // Predicated region
    $region46: #{transformer_decoder.1} parent=1 // pred_check
      _
    $region47: #{transformer_decoder.1} parent=1 // pred_check_branch
      %64 = sbr.rel (0) target = $region49
    $region48: #{transformer_decoder.1} parent=1 // pred_region
      _
    $region49: #{transformer_decoder.1} parent=1 // pred_fallthru
      _
    // Predicated region
    $region50: #{transformer_decoder.1} parent=1 // pred_check
      _
    $region51: #{transformer_decoder.1} parent=1 // pred_check_branch
      %66 = sbr.rel (0) target = $region53
    $region52: #{transformer_decoder.1} parent=1 // pred_region
      %68 = vsyncadd [#allocation6], 0
      %s70 = sshll.u32 %s12, 4
      %s71 = int_to_ptr.hbm [resolvable:$true] %s70
      %s72 = sshll.u32 [#allocation7], 4
      %s73 = int_to_ptr.vmem [resolvable:$true] %s72
      %75 = dma.hbm_to_vmem [thread:$0]  %s71, 16, %s73, [#allocation6]
    $region53: #{transformer_decoder.1} parent=1 // pred_fallthru
      _
    // Predicated region
    $region54: #{transformer_decoder.1} parent=1 // pred_check
      _
    $region55: #{transformer_decoder.1} parent=1 // pred_check_branch
      %77 = sbr.rel (0) target = $region57
    $region56: #{transformer_decoder.1} parent=1 // pred_region
      %79 = dma.done [#allocation3], 256
    $region57: #{transformer_decoder.1} parent=1 // pred_fallthru
      _
    // Predicated region
    $region58: #{transformer_decoder.1} parent=1 // pred_check
      _
    $region59: #{transformer_decoder.1} parent=1 // pred_check_branch
      %81 = sbr.rel (0) target = $region61
    $region60: #{transformer_decoder.1} parent=1 // pred_region
      %83 = dma.done [#allocation6], 16
    $region61: #{transformer_decoder.1} parent=1 // pred_fallthru
      _
    // Predicated region
    $region62: #{transformer_decoder.1} parent=1 // pred_check
      _
    $region63: #{transformer_decoder.1} parent=1 // pred_check_branch
      %85 = sbr.rel (0) target = $region65
    $region64: #{transformer_decoder.1} parent=1 // pred_region
      %87 = dma.done [#allocation6], 16
    $region65: #{transformer_decoder.1} parent=1 // pred_fallthru
      _
    %v88 = vld [vmem:[%s0] sm:$0xff]
    %v89 = vld [vmem:[%s0 + $0x8] sm:$0xff]
    %v90 = vld [vmem:[#allocation2] sm:$0xff]
    %v91 = vld [vmem:[#allocation2 + $0x8] sm:$0xff]
    %v92 = vld [vmem:[%s7] sm:$0x1]
    %v93 = vld [vmem:[%s8] sm:$0x1]
    %v94 = vld [vmem:[%s6] sm:$0x1]
    %v95 = vld [vmem:[%s5] sm:$0xff]
    %v96 = vld [vmem:[%s5 + $0x8] sm:$0xff]
    %v97 = vld [vmem:[%s5 + $0x10] sm:$0xff]
    %v98 = vld [vmem:[%s5 + $0x18] sm:$0xff]
    %v99 = vld [vmem:[%s3] sm:$0xff]
    %v100 = vld [vmem:[%s3 + $0x8] sm:$0xff]
    %v101 = vld [vmem:[%s3 + $0x10] sm:$0xff]
    %v102 = vld [vmem:[%s3 + $0x18] sm:$0xff]
    %v103 = vld [vmem:[%s4] sm:$0x1]
    %v104 = vld [vmem:[%s2] sm:$0xff]
    %v106 = vperm.slane %v103, 0
    %vm108 = vcmask 261120
    %v110 = vsel %vm108, %v88, 0
    %v113 = vsel %vm108, %v89, 0
    %115 = vmatpush.msra.mxu0 0.0
    %116 = vmatpush.msra.mxu0 0.0
    %117 = vmatpush.msra.mxu0 0.0
    %118 = vmatpush.msra.mxu0 0.0
    %119 = vmatpush.msra.mxu0 0.0
    %120 = vmatpush.msra.mxu0 0.0
    %121 = vmatpush.msra.mxu0 0.0
    %122 = vmatpush.msra.mxu0 0.0
    %123 = vmatpush.msra.mxu0 0.0
    %124 = vmatpush.msra.mxu0 0.0
    %125 = vmatpush.msra.mxu0 0.0
    %126 = vmatpush.msra.mxu0 0.0
    %127 = vmatpush.msra.mxu0 %v102
    %128 = vmatpush.msra.mxu0 %v101
    %129 = vmatpush.msra.mxu0 %v100
    %130 = vmatpush.msra.mxu0 %v99
    %131 = vmatmul.f32.gmra.mxu0 %v110
    %v132 = vpop.f32.mrf.mxu0
    %v133 = vadd.f32 %v106, %v132
    %134 = vmatmul.f32.gmra.mxu0 %v113
    %v135 = vpop.f32.mrf.mxu0
    %v136 = vadd.f32 %v106, %v135
    %137 = vdwg.mxu0
    %v139 = vsel %vm108, %v90, 0
    %v142 = vsel %vm108, %v91, 0
    %144 = vmatpush.msra.mxu0 0.0
    %145 = vmatpush.msra.mxu0 0.0
    %146 = vmatpush.msra.mxu0 0.0
    %147 = vmatpush.msra.mxu0 0.0
    %148 = vmatpush.msra.mxu0 0.0
    %149 = vmatpush.msra.mxu0 0.0
    %150 = vmatpush.msra.mxu0 0.0
    %151 = vmatpush.msra.mxu0 0.0
    %152 = vmatpush.msra.mxu0 0.0
    %153 = vmatpush.msra.mxu0 0.0
    %154 = vmatpush.msra.mxu0 0.0
    %155 = vmatpush.msra.mxu0 0.0
    %156 = vmatpush.msra.mxu0 %v102
    %157 = vmatpush.msra.mxu0 %v101
    %158 = vmatpush.msra.mxu0 %v100
    %159 = vmatpush.msra.mxu0 %v99
    %160 = vmatmul.f32.gmra.mxu0 %v139
    %v161 = vpop.f32.mrf.mxu0
    %v162 = vadd.f32 %v106, %v161
    %163 = vmatmul.f32.gmra.mxu0 %v142
    %v164 = vpop.f32.mrf.mxu0
    %v165 = vadd.f32 %v106, %v164
    %166 = vdwg.mxu0
    %168 = vrot.lane.b32.xlu0 %v133, 96
    %v169 = vpop.permute.xlu0 %168
    %vm170 = vcmask 64512
    %v171 = vsel %vm170, %v133, 0
    %v173 = vsel %vm170, %v169, 0
    %175 = vmatpush.xpose.msra.mxu0 0.0
    %176 = vmatpush.xpose.msra.mxu0 0.0
    %177 = vmatpush.xpose.msra.mxu0 0.0
    %178 = vmatpush.xpose.msra.mxu0 0.0
    %179 = vmatpush.xpose.msra.mxu0 0.0
    %180 = vmatpush.xpose.msra.mxu0 0.0
    %181 = vmatpush.xpose.msra.mxu0 0.0
    %182 = vmatpush.xpose.msra.mxu0 0.0
    %183 = vmatpush.xpose.msra.mxu0 0.0
    %184 = vmatpush.xpose.msra.mxu0 0.0
    %185 = vmatpush.xpose.msra.mxu0 0.0
    %186 = vmatpush.xpose.msra.mxu0 0.0
    %187 = vmatpush.xpose.msra.mxu0 0.0
    %188 = vmatpush.xpose.msra.mxu0 0.0
    %189 = vmatpush.xpose.msra.mxu0 0.0
    %190 = vmatpush.xpose.msra.mxu0 %v173
    %191 = vmatmul.f32.gmra.mxu0 %v171
    %v192 = vpop.f32.mrf.mxu0
    %v193 = vadd.f32 %v104, %v192
    %194 = vdwg.mxu0
    %v195 = vsel %vm170, %v193, -inf
    %196 = vmax.xlane.f32.xlu0 %v195
    %v197 = vpop.xlane.xlu0 %196
    %v198 = vsub.f32 %v193, %v197
    %v199 = vmul.f32 %v198, 1.442695
    %v200 = vpow.pop %v199
    %v201 = vsel %vm170, %v200, 0.0
    %202 = vadd.xlane.f32.xlu0 %v201
    %v203 = vpop.xlane.xlu0 %202
    %v204 = vrcp.pop %v203
    %v205 = vmul.f32 %v203, %v204
    %v206 = vsub.f32 1.0, %v205
    %v207 = vmul.f32 %v204, %v206
    %v208 = vadd.f32 %v204, %v207
    %vm209 = vweird.f32 %v203
    %vm210 = vweird.f32 %v204
    %vm211 = vmor %vm209, %vm210
    %v212 = vsel %vm211, %v204, %v208
    %v213 = vand.u32 2147483647, %v203
    %vm214 = vcmp.eq.f32.partialorder %v213, 8.507059e+37
    %v215 = vand.u32 %v203, 2147483648
    %v216 = vor.u32 1.1754944e-38, %v215
    %v217 = vsel %vm214, %v216, %v212
    %v218 = vmul.f32 %v200, %v217
    %219 = vrot.lane.b32.xlu0 %v133, 64
    %v220 = vpop.permute.xlu0 %219
    %v223 = vsel %vm170, %v218, 0
    %225 = vmatpush.msra.mxu0 0.0
    %226 = vmatpush.msra.mxu0 0.0
    %227 = vmatpush.msra.mxu0 0.0
    %228 = vmatpush.msra.mxu0 0.0
    %229 = vmatpush.msra.mxu0 0.0
    %230 = vmatpush.msra.mxu0 0.0
    %231 = vmatpush.msra.mxu0 0.0
    %232 = vmatpush.msra.mxu0 0.0
    %233 = vmatpush.msra.mxu0 0.0
    %234 = vmatpush.msra.mxu0 0.0
    %235 = vmatpush.msra.mxu0 0.0
    %236 = vmatpush.msra.mxu0 0.0
    %237 = vmatpush.msra.mxu0 0.0
    %238 = vmatpush.msra.mxu0 0.0
    %239 = vmatpush.msra.mxu0 0.0
    %240 = vmatpush.msra.mxu0 %v220
    %241 = vmatmul.f32.gmra.mxu0 %v223
    %v242 = vpop.f32.mrf.mxu0
    %v243 = vadd.f32 0.0, %v242
    %244 = vdwg.mxu0
    %245 = vrot.lane.b32.xlu0 %v133, 120
    %v246 = vpop.permute.xlu0 %245
    %247 = vrot.lane.b32.xlu0 %v133, 88
    %v248 = vpop.permute.xlu0 %247
    %v249 = vsel %vm170, %v246, 0
    %v251 = vsel %vm170, %v248, 0
    %253 = vmatpush.xpose.msra.mxu0 0.0
    %254 = vmatpush.xpose.msra.mxu0 0.0
    %255 = vmatpush.xpose.msra.mxu0 0.0
    %256 = vmatpush.xpose.msra.mxu0 0.0
    %257 = vmatpush.xpose.msra.mxu0 0.0
    %258 = vmatpush.xpose.msra.mxu0 0.0
    %259 = vmatpush.xpose.msra.mxu0 0.0
    %260 = vmatpush.xpose.msra.mxu0 0.0
    %261 = vmatpush.xpose.msra.mxu0 0.0
    %262 = vmatpush.xpose.msra.mxu0 0.0
    %263 = vmatpush.xpose.msra.mxu0 0.0
    %264 = vmatpush.xpose.msra.mxu0 0.0
    %265 = vmatpush.xpose.msra.mxu0 0.0
    %266 = vmatpush.xpose.msra.mxu0 0.0
    %267 = vmatpush.xpose.msra.mxu0 0.0
    %268 = vmatpush.xpose.msra.mxu0 %v251
    %269 = vmatmul.f32.gmra.mxu0 %v249
    %v270 = vpop.f32.mrf.mxu0
    %v271 = vadd.f32 %v104, %v270
    %272 = vdwg.mxu0
    %v273 = vsel %vm170, %v271, -inf
    %274 = vmax.xlane.f32.xlu0 %v273
    %v275 = vpop.xlane.xlu0 %274
    %v276 = vsub.f32 %v271, %v275
    %v277 = vmul.f32 %v276, 1.442695
    %v278 = vpow.pop %v277
    %v279 = vsel %vm170, %v278, 0.0
    %280 = vadd.xlane.f32.xlu0 %v279
    %v281 = vpop.xlane.xlu0 %280
    %v282 = vrcp.pop %v281
    %v283 = vmul.f32 %v281, %v282
    %v284 = vsub.f32 1.0, %v283
    %v285 = vmul.f32 %v282, %v284
    %v286 = vadd.f32 %v282, %v285
    %vm287 = vweird.f32 %v281
    %vm288 = vweird.f32 %v282
    %vm289 = vmor %vm287, %vm288
    %v290 = vsel %vm289, %v282, %v286
    %v291 = vand.u32 2147483647, %v281
    %vm292 = vcmp.eq.f32.partialorder %v291, 8.507059e+37
    %v293 = vand.u32 %v281, 2147483648
    %v294 = vor.u32 1.1754944e-38, %v293
    %v295 = vsel %vm292, %v294, %v290
    %v296 = vmul.f32 %v278, %v295
    %297 = vrot.lane.b32.xlu0 %v133, 56
    %v298 = vpop.permute.xlu0 %297
    %v301 = vsel %vm170, %v296, 0
    %303 = vmatpush.msra.mxu0 0.0
    %304 = vmatpush.msra.mxu0 0.0
    %305 = vmatpush.msra.mxu0 0.0
    %306 = vmatpush.msra.mxu0 0.0
    %307 = vmatpush.msra.mxu0 0.0
    %308 = vmatpush.msra.mxu0 0.0
    %309 = vmatpush.msra.mxu0 0.0
    %310 = vmatpush.msra.mxu0 0.0
    %311 = vmatpush.msra.mxu0 0.0
    %312 = vmatpush.msra.mxu0 0.0
    %313 = vmatpush.msra.mxu0 0.0
    %314 = vmatpush.msra.mxu0 0.0
    %315 = vmatpush.msra.mxu0 0.0
    %316 = vmatpush.msra.mxu0 0.0
    %317 = vmatpush.msra.mxu0 0.0
    %318 = vmatpush.msra.mxu0 %v298
    %319 = vmatmul.f32.gmra.mxu0 %v301
    %v320 = vpop.f32.mrf.mxu0
    %v321 = vadd.f32 0.0, %v320
    %322 = vdwg.mxu0
    %323 = vrot.lane.b32.xlu0 %v133, 112
    %v324 = vpop.permute.xlu0 %323
    %325 = vrot.lane.b32.xlu0 %v133, 80
    %v326 = vpop.permute.xlu0 %325
    %v327 = vsel %vm170, %v324, 0
    %v329 = vsel %vm170, %v326, 0
    %331 = vmatpush.xpose.msra.mxu0 0.0
    %332 = vmatpush.xpose.msra.mxu0 0.0
    %333 = vmatpush.xpose.msra.mxu0 0.0
    %334 = vmatpush.xpose.msra.mxu0 0.0
    %335 = vmatpush.xpose.msra.mxu0 0.0
    %336 = vmatpush.xpose.msra.mxu0 0.0
    %337 = vmatpush.xpose.msra.mxu0 0.0
    %338 = vmatpush.xpose.msra.mxu0 0.0
    %339 = vmatpush.xpose.msra.mxu0 0.0
    %340 = vmatpush.xpose.msra.mxu0 0.0
    %341 = vmatpush.xpose.msra.mxu0 0.0
    %342 = vmatpush.xpose.msra.mxu0 0.0
    %343 = vmatpush.xpose.msra.mxu0 0.0
    %344 = vmatpush.xpose.msra.mxu0 0.0
    %345 = vmatpush.xpose.msra.mxu0 0.0
    %346 = vmatpush.xpose.msra.mxu0 %v329
    %347 = vmatmul.f32.gmra.mxu0 %v327
    %v348 = vpop.f32.mrf.mxu0
    %v349 = vadd.f32 %v104, %v348
    %350 = vdwg.mxu0
    %v351 = vsel %vm170, %v349, -inf
    %352 = vmax.xlane.f32.xlu0 %v351
    %v353 = vpop.xlane.xlu0 %352
    %v354 = vsub.f32 %v349, %v353
    %v355 = vmul.f32 %v354, 1.442695
    %v356 = vpow.pop %v355
    %v357 = vsel %vm170, %v356, 0.0
    %358 = vadd.xlane.f32.xlu0 %v357
    %v359 = vpop.xlane.xlu0 %358
    %v360 = vrcp.pop %v359
    %v361 = vmul.f32 %v359, %v360
    %v362 = vsub.f32 1.0, %v361
    %v363 = vmul.f32 %v360, %v362
    %v364 = vadd.f32 %v360, %v363
    %vm365 = vweird.f32 %v359
    %vm366 = vweird.f32 %v360
    %vm367 = vmor %vm365, %vm366
    %v368 = vsel %vm367, %v360, %v364
    %v369 = vand.u32 2147483647, %v359
    %vm370 = vcmp.eq.f32.partialorder %v369, 8.507059e+37
    %v371 = vand.u32 %v359, 2147483648
    %v372 = vor.u32 1.1754944e-38, %v371
    %v373 = vsel %vm370, %v372, %v368
    %v374 = vmul.f32 %v356, %v373
    %375 = vrot.lane.b32.xlu0 %v133, 48
    %v376 = vpop.permute.xlu0 %375
    %v379 = vsel %vm170, %v374, 0
    %381 = vmatpush.msra.mxu0 0.0
    %382 = vmatpush.msra.mxu0 0.0
    %383 = vmatpush.msra.mxu0 0.0
    %384 = vmatpush.msra.mxu0 0.0
    %385 = vmatpush.msra.mxu0 0.0
    %386 = vmatpush.msra.mxu0 0.0
    %387 = vmatpush.msra.mxu0 0.0
    %388 = vmatpush.msra.mxu0 0.0
    %389 = vmatpush.msra.mxu0 0.0
    %390 = vmatpush.msra.mxu0 0.0
    %391 = vmatpush.msra.mxu0 0.0
    %392 = vmatpush.msra.mxu0 0.0
    %393 = vmatpush.msra.mxu0 0.0
    %394 = vmatpush.msra.mxu0 0.0
    %395 = vmatpush.msra.mxu0 0.0
    %396 = vmatpush.msra.mxu0 %v376
    %397 = vmatmul.f32.gmra.mxu0 %v379
    %v398 = vpop.f32.mrf.mxu0
    %v399 = vadd.f32 0.0, %v398
    %400 = vdwg.mxu0
    %401 = vrot.lane.b32.xlu0 %v133, 104
    %v402 = vpop.permute.xlu0 %401
    %403 = vrot.lane.b32.xlu0 %v133, 72
    %v404 = vpop.permute.xlu0 %403
    %v405 = vsel %vm170, %v402, 0
    %v407 = vsel %vm170, %v404, 0
    %409 = vmatpush.xpose.msra.mxu0 0.0
    %410 = vmatpush.xpose.msra.mxu0 0.0
    %411 = vmatpush.xpose.msra.mxu0 0.0
    %412 = vmatpush.xpose.msra.mxu0 0.0
    %413 = vmatpush.xpose.msra.mxu0 0.0
    %414 = vmatpush.xpose.msra.mxu0 0.0
    %415 = vmatpush.xpose.msra.mxu0 0.0
    %416 = vmatpush.xpose.msra.mxu0 0.0
    %417 = vmatpush.xpose.msra.mxu0 0.0
    %418 = vmatpush.xpose.msra.mxu0 0.0
    %419 = vmatpush.xpose.msra.mxu0 0.0
    %420 = vmatpush.xpose.msra.mxu0 0.0
    %421 = vmatpush.xpose.msra.mxu0 0.0
    %422 = vmatpush.xpose.msra.mxu0 0.0
    %423 = vmatpush.xpose.msra.mxu0 0.0
    %424 = vmatpush.xpose.msra.mxu0 %v407
    %425 = vmatmul.f32.gmra.mxu0 %v405
    %v426 = vpop.f32.mrf.mxu0
    %v427 = vadd.f32 %v104, %v426
    %428 = vdwg.mxu0
    %v429 = vsel %vm170, %v427, -inf
    %430 = vmax.xlane.f32.xlu0 %v429
    %v431 = vpop.xlane.xlu0 %430
    %v432 = vsub.f32 %v427, %v431
    %v433 = vmul.f32 %v432, 1.442695
    %v434 = vpow.pop %v433
    %v435 = vsel %vm170, %v434, 0.0
    %436 = vadd.xlane.f32.xlu0 %v435
    %v437 = vpop.xlane.xlu0 %436
    %v438 = vrcp.pop %v437
    %v439 = vmul.f32 %v437, %v438
    %v440 = vsub.f32 1.0, %v439
    %v441 = vmul.f32 %v438, %v440
    %v442 = vadd.f32 %v438, %v441
    %vm443 = vweird.f32 %v437
    %vm444 = vweird.f32 %v438
    %vm445 = vmor %vm443, %vm444
    %v446 = vsel %vm445, %v438, %v442
    %v447 = vand.u32 2147483647, %v437
    %vm448 = vcmp.eq.f32.partialorder %v447, 8.507059e+37
    %v449 = vand.u32 %v437, 2147483648
    %v450 = vor.u32 1.1754944e-38, %v449
    %v451 = vsel %vm448, %v450, %v446
    %v452 = vmul.f32 %v434, %v451
    %453 = vrot.lane.b32.xlu0 %v133, 40
    %v454 = vpop.permute.xlu0 %453
    %v457 = vsel %vm170, %v452, 0
    %459 = vmatpush.msra.mxu0 0.0
    %460 = vmatpush.msra.mxu0 0.0
    %461 = vmatpush.msra.mxu0 0.0
    %462 = vmatpush.msra.mxu0 0.0
    %463 = vmatpush.msra.mxu0 0.0
    %464 = vmatpush.msra.mxu0 0.0
    %465 = vmatpush.msra.mxu0 0.0
    %466 = vmatpush.msra.mxu0 0.0
    %467 = vmatpush.msra.mxu0 0.0
    %468 = vmatpush.msra.mxu0 0.0
    %469 = vmatpush.msra.mxu0 0.0
    %470 = vmatpush.msra.mxu0 0.0
    %471 = vmatpush.msra.mxu0 0.0
    %472 = vmatpush.msra.mxu0 0.0
    %473 = vmatpush.msra.mxu0 0.0
    %474 = vmatpush.msra.mxu0 %v454
    %475 = vmatmul.f32.gmra.mxu0 %v457
    %v476 = vpop.f32.mrf.mxu0
    %v477 = vadd.f32 0.0, %v476
    %478 = vdwg.mxu0
    %480 = vrot.lane.b32.xlu0 %v321, 8
    %v481 = vpop.permute.xlu0 %480
    %484 = vrot.lane.b32.xlu0 %v399, 16
    %v485 = vpop.permute.xlu0 %484
    %488 = vrot.lane.b32.xlu0 %v477, 24
    %v489 = vpop.permute.xlu0 %488
    %v491 = vsel %vm170, %v243, %v481
    %vm492 = vcmask 130048
    %v493 = vsel %vm492, %v491, %v485
    %vm494 = vcmask 195584
    %v495 = vsel %vm494, %v493, %v489
    %497 = vrot.lane.b32.xlu0 %v136, 96
    %v498 = vpop.permute.xlu0 %497
    %v499 = vsel %vm170, %v136, 0
    %v501 = vsel %vm170, %v498, 0
    %503 = vmatpush.xpose.msra.mxu0 0.0
    %504 = vmatpush.xpose.msra.mxu0 0.0
    %505 = vmatpush.xpose.msra.mxu0 0.0
    %506 = vmatpush.xpose.msra.mxu0 0.0
    %507 = vmatpush.xpose.msra.mxu0 0.0
    %508 = vmatpush.xpose.msra.mxu0 0.0
    %509 = vmatpush.xpose.msra.mxu0 0.0
    %510 = vmatpush.xpose.msra.mxu0 0.0
    %511 = vmatpush.xpose.msra.mxu0 0.0
    %512 = vmatpush.xpose.msra.mxu0 0.0
    %513 = vmatpush.xpose.msra.mxu0 0.0
    %514 = vmatpush.xpose.msra.mxu0 0.0
    %515 = vmatpush.xpose.msra.mxu0 0.0
    %516 = vmatpush.xpose.msra.mxu0 0.0
    %517 = vmatpush.xpose.msra.mxu0 0.0
    %518 = vmatpush.xpose.msra.mxu0 %v501
    %519 = vmatmul.f32.gmra.mxu0 %v499
    %v520 = vpop.f32.mrf.mxu0
    %v521 = vadd.f32 %v104, %v520
    %522 = vdwg.mxu0
    %v523 = vsel %vm170, %v521, -inf
    %524 = vmax.xlane.f32.xlu0 %v523
    %v525 = vpop.xlane.xlu0 %524
    %v526 = vsub.f32 %v521, %v525
    %v527 = vmul.f32 %v526, 1.442695
    %v528 = vpow.pop %v527
    %v529 = vsel %vm170, %v528, 0.0
    %530 = vadd.xlane.f32.xlu0 %v529
    %v531 = vpop.xlane.xlu0 %530
    %v532 = vrcp.pop %v531
    %v533 = vmul.f32 %v531, %v532
    %v534 = vsub.f32 1.0, %v533
    %v535 = vmul.f32 %v532, %v534
    %v536 = vadd.f32 %v532, %v535
    %vm537 = vweird.f32 %v531
    %vm538 = vweird.f32 %v532
    %vm539 = vmor %vm537, %vm538
    %v540 = vsel %vm539, %v532, %v536
    %v541 = vand.u32 2147483647, %v531
    %vm542 = vcmp.eq.f32.partialorder %v541, 8.507059e+37
    %v543 = vand.u32 %v531, 2147483648
    %v544 = vor.u32 1.1754944e-38, %v543
    %v545 = vsel %vm542, %v544, %v540
    %v546 = vmul.f32 %v528, %v545
    %547 = vrot.lane.b32.xlu0 %v136, 64
    %v548 = vpop.permute.xlu0 %547
    %v551 = vsel %vm170, %v546, 0
    %553 = vmatpush.msra.mxu0 0.0
    %554 = vmatpush.msra.mxu0 0.0
    %555 = vmatpush.msra.mxu0 0.0
    %556 = vmatpush.msra.mxu0 0.0
    %557 = vmatpush.msra.mxu0 0.0
    %558 = vmatpush.msra.mxu0 0.0
    %559 = vmatpush.msra.mxu0 0.0
    %560 = vmatpush.msra.mxu0 0.0
    %561 = vmatpush.msra.mxu0 0.0
    %562 = vmatpush.msra.mxu0 0.0
    %563 = vmatpush.msra.mxu0 0.0
    %564 = vmatpush.msra.mxu0 0.0
    %565 = vmatpush.msra.mxu0 0.0
    %566 = vmatpush.msra.mxu0 0.0
    %567 = vmatpush.msra.mxu0 0.0
    %568 = vmatpush.msra.mxu0 %v548
    %569 = vmatmul.f32.gmra.mxu0 %v551
    %v570 = vpop.f32.mrf.mxu0
    %v571 = vadd.f32 0.0, %v570
    %572 = vdwg.mxu0
    %573 = vrot.lane.b32.xlu0 %v136, 120
    %v574 = vpop.permute.xlu0 %573
    %575 = vrot.lane.b32.xlu0 %v136, 88
    %v576 = vpop.permute.xlu0 %575
    %v577 = vsel %vm170, %v574, 0
    %v579 = vsel %vm170, %v576, 0
    %581 = vmatpush.xpose.msra.mxu0 0.0
    %582 = vmatpush.xpose.msra.mxu0 0.0
    %583 = vmatpush.xpose.msra.mxu0 0.0
    %584 = vmatpush.xpose.msra.mxu0 0.0
    %585 = vmatpush.xpose.msra.mxu0 0.0
    %586 = vmatpush.xpose.msra.mxu0 0.0
    %587 = vmatpush.xpose.msra.mxu0 0.0
    %588 = vmatpush.xpose.msra.mxu0 0.0
    %589 = vmatpush.xpose.msra.mxu0 0.0
    %590 = vmatpush.xpose.msra.mxu0 0.0
    %591 = vmatpush.xpose.msra.mxu0 0.0
    %592 = vmatpush.xpose.msra.mxu0 0.0
    %593 = vmatpush.xpose.msra.mxu0 0.0
    %594 = vmatpush.xpose.msra.mxu0 0.0
    %595 = vmatpush.xpose.msra.mxu0 0.0
    %596 = vmatpush.xpose.msra.mxu0 %v579
    %597 = vmatmul.f32.gmra.mxu0 %v577
    %v598 = vpop.f32.mrf.mxu0
    %v599 = vadd.f32 %v104, %v598
    %600 = vdwg.mxu0
    %v601 = vsel %vm170, %v599, -inf
    %602 = vmax.xlane.f32.xlu0 %v601
    %v603 = vpop.xlane.xlu0 %602
    %v604 = vsub.f32 %v599, %v603
    %v605 = vmul.f32 %v604, 1.442695
    %v606 = vpow.pop %v605
    %v607 = vsel %vm170, %v606, 0.0
    %608 = vadd.xlane.f32.xlu0 %v607
    %v609 = vpop.xlane.xlu0 %608
    %v610 = vrcp.pop %v609
    %v611 = vmul.f32 %v609, %v610
    %v612 = vsub.f32 1.0, %v611
    %v613 = vmul.f32 %v610, %v612
    %v614 = vadd.f32 %v610, %v613
    %vm615 = vweird.f32 %v609
    %vm616 = vweird.f32 %v610
    %vm617 = vmor %vm615, %vm616
    %v618 = vsel %vm617, %v610, %v614
    %v619 = vand.u32 2147483647, %v609
    %vm620 = vcmp.eq.f32.partialorder %v619, 8.507059e+37
    %v621 = vand.u32 %v609, 2147483648
    %v622 = vor.u32 1.1754944e-38, %v621
    %v623 = vsel %vm620, %v622, %v618
    %v624 = vmul.f32 %v606, %v623
    %625 = vrot.lane.b32.xlu0 %v136, 56
    %v626 = vpop.permute.xlu0 %625
    %v629 = vsel %vm170, %v624, 0
    %631 = vmatpush.msra.mxu0 0.0
    %632 = vmatpush.msra.mxu0 0.0
    %633 = vmatpush.msra.mxu0 0.0
    %634 = vmatpush.msra.mxu0 0.0
    %635 = vmatpush.msra.mxu0 0.0
    %636 = vmatpush.msra.mxu0 0.0
    %637 = vmatpush.msra.mxu0 0.0
    %638 = vmatpush.msra.mxu0 0.0
    %639 = vmatpush.msra.mxu0 0.0
    %640 = vmatpush.msra.mxu0 0.0
    %641 = vmatpush.msra.mxu0 0.0
    %642 = vmatpush.msra.mxu0 0.0
    %643 = vmatpush.msra.mxu0 0.0
    %644 = vmatpush.msra.mxu0 0.0
    %645 = vmatpush.msra.mxu0 0.0
    %646 = vmatpush.msra.mxu0 %v626
    %647 = vmatmul.f32.gmra.mxu0 %v629
    %v648 = vpop.f32.mrf.mxu0
    %v649 = vadd.f32 0.0, %v648
    %650 = vdwg.mxu0
    %651 = vrot.lane.b32.xlu0 %v136, 112
    %v652 = vpop.permute.xlu0 %651
    %653 = vrot.lane.b32.xlu0 %v136, 80
    %v654 = vpop.permute.xlu0 %653
    %v655 = vsel %vm170, %v652, 0
    %v657 = vsel %vm170, %v654, 0
    %659 = vmatpush.xpose.msra.mxu0 0.0
    %660 = vmatpush.xpose.msra.mxu0 0.0
    %661 = vmatpush.xpose.msra.mxu0 0.0
    %662 = vmatpush.xpose.msra.mxu0 0.0
    %663 = vmatpush.xpose.msra.mxu0 0.0
    %664 = vmatpush.xpose.msra.mxu0 0.0
    %665 = vmatpush.xpose.msra.mxu0 0.0
    %666 = vmatpush.xpose.msra.mxu0 0.0
    %667 = vmatpush.xpose.msra.mxu0 0.0
    %668 = vmatpush.xpose.msra.mxu0 0.0
    %669 = vmatpush.xpose.msra.mxu0 0.0
    %670 = vmatpush.xpose.msra.mxu0 0.0
    %671 = vmatpush.xpose.msra.mxu0 0.0
    %672 = vmatpush.xpose.msra.mxu0 0.0
    %673 = vmatpush.xpose.msra.mxu0 0.0
    %674 = vmatpush.xpose.msra.mxu0 %v657
    %675 = vmatmul.f32.gmra.mxu0 %v655
    %v676 = vpop.f32.mrf.mxu0
    %v677 = vadd.f32 %v104, %v676
    %678 = vdwg.mxu0
    %v679 = vsel %vm170, %v677, -inf
    %680 = vmax.xlane.f32.xlu0 %v679
    %v681 = vpop.xlane.xlu0 %680
    %v682 = vsub.f32 %v677, %v681
    %v683 = vmul.f32 %v682, 1.442695
    %v684 = vpow.pop %v683
    %v685 = vsel %vm170, %v684, 0.0
    %686 = vadd.xlane.f32.xlu0 %v685
    %v687 = vpop.xlane.xlu0 %686
    %v688 = vrcp.pop %v687
    %v689 = vmul.f32 %v687, %v688
    %v690 = vsub.f32 1.0, %v689
    %v691 = vmul.f32 %v688, %v690
    %v692 = vadd.f32 %v688, %v691
    %vm693 = vweird.f32 %v687
    %vm694 = vweird.f32 %v688
    %vm695 = vmor %vm693, %vm694
    %v696 = vsel %vm695, %v688, %v692
    %v697 = vand.u32 2147483647, %v687
    %vm698 = vcmp.eq.f32.partialorder %v697, 8.507059e+37
    %v699 = vand.u32 %v687, 2147483648
    %v700 = vor.u32 1.1754944e-38, %v699
    %v701 = vsel %vm698, %v700, %v696
    %v702 = vmul.f32 %v684, %v701
    %703 = vrot.lane.b32.xlu0 %v136, 48
    %v704 = vpop.permute.xlu0 %703
    %v707 = vsel %vm170, %v702, 0
    %709 = vmatpush.msra.mxu0 0.0
    %710 = vmatpush.msra.mxu0 0.0
    %711 = vmatpush.msra.mxu0 0.0
    %712 = vmatpush.msra.mxu0 0.0
    %713 = vmatpush.msra.mxu0 0.0
    %714 = vmatpush.msra.mxu0 0.0
    %715 = vmatpush.msra.mxu0 0.0
    %716 = vmatpush.msra.mxu0 0.0
    %717 = vmatpush.msra.mxu0 0.0
    %718 = vmatpush.msra.mxu0 0.0
    %719 = vmatpush.msra.mxu0 0.0
    %720 = vmatpush.msra.mxu0 0.0
    %721 = vmatpush.msra.mxu0 0.0
    %722 = vmatpush.msra.mxu0 0.0
    %723 = vmatpush.msra.mxu0 0.0
    %724 = vmatpush.msra.mxu0 %v704
    %725 = vmatmul.f32.gmra.mxu0 %v707
    %v726 = vpop.f32.mrf.mxu0
    %v727 = vadd.f32 0.0, %v726
    %728 = vdwg.mxu0
    %729 = vrot.lane.b32.xlu0 %v136, 104
    %v730 = vpop.permute.xlu0 %729
    %731 = vrot.lane.b32.xlu0 %v136, 72
    %v732 = vpop.permute.xlu0 %731
    %v733 = vsel %vm170, %v730, 0
    %v735 = vsel %vm170, %v732, 0
    %737 = vmatpush.xpose.msra.mxu0 0.0
    %738 = vmatpush.xpose.msra.mxu0 0.0
    %739 = vmatpush.xpose.msra.mxu0 0.0
    %740 = vmatpush.xpose.msra.mxu0 0.0
    %741 = vmatpush.xpose.msra.mxu0 0.0
    %742 = vmatpush.xpose.msra.mxu0 0.0
    %743 = vmatpush.xpose.msra.mxu0 0.0
    %744 = vmatpush.xpose.msra.mxu0 0.0
    %745 = vmatpush.xpose.msra.mxu0 0.0
    %746 = vmatpush.xpose.msra.mxu0 0.0
    %747 = vmatpush.xpose.msra.mxu0 0.0
    %748 = vmatpush.xpose.msra.mxu0 0.0
    %749 = vmatpush.xpose.msra.mxu0 0.0
    %750 = vmatpush.xpose.msra.mxu0 0.0
    %751 = vmatpush.xpose.msra.mxu0 0.0
    %752 = vmatpush.xpose.msra.mxu0 %v735
    %753 = vmatmul.f32.gmra.mxu0 %v733
    %v754 = vpop.f32.mrf.mxu0
    %v755 = vadd.f32 %v104, %v754
    %756 = vdwg.mxu0
    %v757 = vsel %vm170, %v755, -inf
    %758 = vmax.xlane.f32.xlu0 %v757
    %v759 = vpop.xlane.xlu0 %758
    %v760 = vsub.f32 %v755, %v759
    %v761 = vmul.f32 %v760, 1.442695
    %v762 = vpow.pop %v761
    %v763 = vsel %vm170, %v762, 0.0
    %764 = vadd.xlane.f32.xlu0 %v763
    %v765 = vpop.xlane.xlu0 %764
    %v766 = vrcp.pop %v765
    %v767 = vmul.f32 %v765, %v766
    %v768 = vsub.f32 1.0, %v767
    %v769 = vmul.f32 %v766, %v768
    %v770 = vadd.f32 %v766, %v769
    %vm771 = vweird.f32 %v765
    %vm772 = vweird.f32 %v766
    %vm773 = vmor %vm771, %vm772
    %v774 = vsel %vm773, %v766, %v770
    %v775 = vand.u32 2147483647, %v765
    %vm776 = vcmp.eq.f32.partialorder %v775, 8.507059e+37
    %v777 = vand.u32 %v765, 2147483648
    %v778 = vor.u32 1.1754944e-38, %v777
    %v779 = vsel %vm776, %v778, %v774
    %v780 = vmul.f32 %v762, %v779
    %781 = vrot.lane.b32.xlu0 %v136, 40
    %v782 = vpop.permute.xlu0 %781
    %v785 = vsel %vm170, %v780, 0
    %787 = vmatpush.msra.mxu0 0.0
    %788 = vmatpush.msra.mxu0 0.0
    %789 = vmatpush.msra.mxu0 0.0
    %790 = vmatpush.msra.mxu0 0.0
    %791 = vmatpush.msra.mxu0 0.0
    %792 = vmatpush.msra.mxu0 0.0
    %793 = vmatpush.msra.mxu0 0.0
    %794 = vmatpush.msra.mxu0 0.0
    %795 = vmatpush.msra.mxu0 0.0
    %796 = vmatpush.msra.mxu0 0.0
    %797 = vmatpush.msra.mxu0 0.0
    %798 = vmatpush.msra.mxu0 0.0
    %799 = vmatpush.msra.mxu0 0.0
    %800 = vmatpush.msra.mxu0 0.0
    %801 = vmatpush.msra.mxu0 0.0
    %802 = vmatpush.msra.mxu0 %v782
    %803 = vmatmul.f32.gmra.mxu0 %v785
    %v804 = vpop.f32.mrf.mxu0
    %v805 = vadd.f32 0.0, %v804
    %806 = vdwg.mxu0
    %808 = vrot.lane.b32.xlu0 %v649, 8
    %v809 = vpop.permute.xlu0 %808
    %812 = vrot.lane.b32.xlu0 %v727, 16
    %v813 = vpop.permute.xlu0 %812
    %816 = vrot.lane.b32.xlu0 %v805, 24
    %v817 = vpop.permute.xlu0 %816
    %v819 = vsel %vm170, %v571, %v809
    %v820 = vsel %vm492, %v819, %v813
    %v821 = vsel %vm494, %v820, %v817
    %v823 = vperm.slane %v94, 0
    %v826 = vsel %vm108, %v495, 0
    %v829 = vsel %vm108, %v821, 0
    %831 = vmatpush.msra.mxu0 0.0
    %832 = vmatpush.msra.mxu0 0.0
    %833 = vmatpush.msra.mxu0 0.0
    %834 = vmatpush.msra.mxu0 0.0
    %835 = vmatpush.msra.mxu0 0.0
    %836 = vmatpush.msra.mxu0 0.0
    %837 = vmatpush.msra.mxu0 0.0
    %838 = vmatpush.msra.mxu0 0.0
    %839 = vmatpush.msra.mxu0 0.0
    %840 = vmatpush.msra.mxu0 0.0
    %841 = vmatpush.msra.mxu0 0.0
    %842 = vmatpush.msra.mxu0 0.0
    %843 = vmatpush.msra.mxu0 %v98
    %844 = vmatpush.msra.mxu0 %v97
    %845 = vmatpush.msra.mxu0 %v96
    %846 = vmatpush.msra.mxu0 %v95
    %847 = vmatmul.f32.gmra.mxu0 %v826
    %v848 = vpop.f32.mrf.mxu0
    %v849 = vadd.f32 %v823, %v848
    %850 = vmatmul.f32.gmra.mxu0 %v829
    %v851 = vpop.f32.mrf.mxu0
    %v852 = vadd.f32 %v823, %v851
    %853 = vdwg.mxu0
    %v854 = vadd.f32 %v849, %v88
    %v855 = vadd.f32 %v852, %v89
    %v856 = vsel %vm108, %v854, 0.0
    %857 = vadd.xlane.f32.xlu0 %v856
    %v858 = vpop.xlane.xlu0 %857
    %v859 = vsel %vm108, %v855, 0.0
    %860 = vadd.xlane.f32.xlu0 %v859
    %v861 = vpop.xlane.xlu0 %860
    %v862 = vrcp.pop 32.0
    %v863 = vmul.f32 32.0, %v862
    %v864 = vsub.f32 1.0, %v863
    %v865 = vmul.f32 %v862, %v864
    %v866 = vadd.f32 %v862, %v865
    %vm867 = vweird.f32 %v862
    %v868 = vsel %vm867, %v862, %v866
    %v869 = vmul.f32 %v858, %v868
    %v870 = vmul.f32 %v861, %v868
    %v871 = vsub.f32 %v854, %v869
    %v872 = vsub.f32 %v855, %v870
    %v873 = vmul.f32 %v871, %v871
    %v874 = vmul.f32 %v872, %v872
    %v875 = vsel %vm108, %v873, 0.0
    %876 = vadd.xlane.f32.xlu0 %v875
    %v877 = vpop.xlane.xlu0 %876
    %v878 = vsel %vm108, %v874, 0.0
    %879 = vadd.xlane.f32.xlu0 %v878
    %v880 = vpop.xlane.xlu0 %879
    %v881 = vmul.f32 %v877, %v868
    %v882 = vmul.f32 %v880, %v868
    %v883 = vadd.f32 %v881, 1e-05
    %v884 = vadd.f32 %v882, 1e-05
    %v885 = vrsqrt.pop %v883
    %v886 = vmul.f32 %v885, %v883
    %v887 = vmul.f32 %v886, %v885
    %v888 = vmul.f32 0.5, %v887
    %v889 = vsub.f32 1.5, %v888
    %v890 = vmul.f32 %v885, %v889
    %vm891 = vweird.f32 %v883
    %vm892 = vweird.f32 %v885
    %vm893 = vmor %vm891, %vm892
    %v894 = vsel %vm893, %v885, %v890
    %v895 = vrsqrt.pop %v884
    %v896 = vmul.f32 %v895, %v884
    %v897 = vmul.f32 %v896, %v895
    %v898 = vmul.f32 0.5, %v897
    %v899 = vsub.f32 1.5, %v898
    %v900 = vmul.f32 %v895, %v899
    %vm901 = vweird.f32 %v884
    %vm902 = vweird.f32 %v895
    %vm903 = vmor %vm901, %vm902
    %v904 = vsel %vm903, %v895, %v900
    %v905 = vmul.f32 %v871, %v894
    %v906 = vmul.f32 %v872, %v904
    %v908 = vperm.slane %v92, 0
    %v910 = vmul.f32 %v905, %v908
    %v911 = vmul.f32 %v906, %v908
    %v913 = vperm.slane %v93, 0
    %v915 = vadd.f32 %v910, %v913
    %v916 = vadd.f32 %v911, %v913
    %918 = vrot.lane.b32.xlu0 %v162, 96
    %v919 = vpop.permute.xlu0 %918
    %v920 = vsel %vm170, %v162, 0
    %v922 = vsel %vm170, %v919, 0
    %924 = vmatpush.xpose.msra.mxu0 0.0
    %925 = vmatpush.xpose.msra.mxu0 0.0
    %926 = vmatpush.xpose.msra.mxu0 0.0
    %927 = vmatpush.xpose.msra.mxu0 0.0
    %928 = vmatpush.xpose.msra.mxu0 0.0
    %929 = vmatpush.xpose.msra.mxu0 0.0
    %930 = vmatpush.xpose.msra.mxu0 0.0
    %931 = vmatpush.xpose.msra.mxu0 0.0
    %932 = vmatpush.xpose.msra.mxu0 0.0
    %933 = vmatpush.xpose.msra.mxu0 0.0
    %934 = vmatpush.xpose.msra.mxu0 0.0
    %935 = vmatpush.xpose.msra.mxu0 0.0
    %936 = vmatpush.xpose.msra.mxu0 0.0
    %937 = vmatpush.xpose.msra.mxu0 0.0
    %938 = vmatpush.xpose.msra.mxu0 0.0
    %939 = vmatpush.xpose.msra.mxu0 %v922
    %940 = vmatmul.f32.gmra.mxu0 %v920
    %v941 = vpop.f32.mrf.mxu0
    %v942 = vadd.f32 0.0, %v941
    %943 = vdwg.mxu0
    %v944 = vsel %vm170, %v942, -inf
    %945 = vmax.xlane.f32.xlu0 %v944
    %v946 = vpop.xlane.xlu0 %945
    %v947 = vsub.f32 %v942, %v946
    %v948 = vmul.f32 %v947, 1.442695
    %v949 = vpow.pop %v948
    %v950 = vsel %vm170, %v949, 0.0
    %951 = vadd.xlane.f32.xlu0 %v950
    %v952 = vpop.xlane.xlu0 %951
    %v953 = vrcp.pop %v952
    %v954 = vmul.f32 %v952, %v953
    %v955 = vsub.f32 1.0, %v954
    %v956 = vmul.f32 %v953, %v955
    %v957 = vadd.f32 %v953, %v956
    %vm958 = vweird.f32 %v952
    %vm959 = vweird.f32 %v953
    %vm960 = vmor %vm958, %vm959
    %v961 = vsel %vm960, %v953, %v957
    %v962 = vand.u32 2147483647, %v952
    %vm963 = vcmp.eq.f32.partialorder %v962, 8.507059e+37
    %v964 = vand.u32 %v952, 2147483648
    %v965 = vor.u32 1.1754944e-38, %v964
    %v966 = vsel %vm963, %v965, %v961
    %v967 = vmul.f32 %v949, %v966
    %v969 = vsel %vm170, %v967, 0
    %971 = vmatpush.msra.mxu0 0.0
    %972 = vmatpush.msra.mxu0 0.0
    %973 = vmatpush.msra.mxu0 0.0
    %974 = vmatpush.msra.mxu0 0.0
    %975 = vmatpush.msra.mxu0 0.0
    %976 = vmatpush.msra.mxu0 0.0
    %977 = vmatpush.msra.mxu0 0.0
    %978 = vmatpush.msra.mxu0 0.0
    %979 = vmatpush.msra.mxu0 0.0
    %980 = vmatpush.msra.mxu0 0.0
    %981 = vmatpush.msra.mxu0 0.0
    %982 = vmatpush.msra.mxu0 0.0
    %983 = vmatpush.msra.mxu0 0.0
    %984 = vmatpush.msra.mxu0 0.0
    %985 = vmatpush.msra.mxu0 0.0
    %986 = vmatpush.msra.mxu0 %v220
    %987 = vmatmul.f32.gmra.mxu0 %v969
    %v988 = vpop.f32.mrf.mxu0
    %v989 = vadd.f32 0.0, %v988
    %990 = vdwg.mxu0
    %991 = vrot.lane.b32.xlu0 %v162, 120
    %v992 = vpop.permute.xlu0 %991
    %993 = vrot.lane.b32.xlu0 %v162, 88
    %v994 = vpop.permute.xlu0 %993
    %v995 = vsel %vm170, %v992, 0
    %v997 = vsel %vm170, %v994, 0
    %999 = vmatpush.xpose.msra.mxu0 0.0
    %1000 = vmatpush.xpose.msra.mxu0 0.0
    %1001 = vmatpush.xpose.msra.mxu0 0.0
    %1002 = vmatpush.xpose.msra.mxu0 0.0
    %1003 = vmatpush.xpose.msra.mxu0 0.0
    %1004 = vmatpush.xpose.msra.mxu0 0.0
    %1005 = vmatpush.xpose.msra.mxu0 0.0
    %1006 = vmatpush.xpose.msra.mxu0 0.0
    %1007 = vmatpush.xpose.msra.mxu0 0.0
    %1008 = vmatpush.xpose.msra.mxu0 0.0
    %1009 = vmatpush.xpose.msra.mxu0 0.0
    %1010 = vmatpush.xpose.msra.mxu0 0.0
    %1011 = vmatpush.xpose.msra.mxu0 0.0
    %1012 = vmatpush.xpose.msra.mxu0 0.0
    %1013 = vmatpush.xpose.msra.mxu0 0.0
    %1014 = vmatpush.xpose.msra.mxu0 %v997
    %1015 = vmatmul.f32.gmra.mxu0 %v995
    %v1016 = vpop.f32.mrf.mxu0
    %v1017 = vadd.f32 0.0, %v1016
    %1018 = vdwg.mxu0
    %v1019 = vsel %vm170, %v1017, -inf
    %1020 = vmax.xlane.f32.xlu0 %v1019
    %v1021 = vpop.xlane.xlu0 %1020
    %v1022 = vsub.f32 %v1017, %v1021
    %v1023 = vmul.f32 %v1022, 1.442695
    %v1024 = vpow.pop %v1023
    %v1025 = vsel %vm170, %v1024, 0.0
    %1026 = vadd.xlane.f32.xlu0 %v1025
    %v1027 = vpop.xlane.xlu0 %1026
    %v1028 = vrcp.pop %v1027
    %v1029 = vmul.f32 %v1027, %v1028
    %v1030 = vsub.f32 1.0, %v1029
    %v1031 = vmul.f32 %v1028, %v1030
    %v1032 = vadd.f32 %v1028, %v1031
    %vm1033 = vweird.f32 %v1027
    %vm1034 = vweird.f32 %v1028
    %vm1035 = vmor %vm1033, %vm1034
    %v1036 = vsel %vm1035, %v1028, %v1032
    %v1037 = vand.u32 2147483647, %v1027
    %vm1038 = vcmp.eq.f32.partialorder %v1037, 8.507059e+37
    %v1039 = vand.u32 %v1027, 2147483648
    %v1040 = vor.u32 1.1754944e-38, %v1039
    %v1041 = vsel %vm1038, %v1040, %v1036
    %v1042 = vmul.f32 %v1024, %v1041
    %v1044 = vsel %vm170, %v1042, 0
    %1046 = vmatpush.msra.mxu0 0.0
    %1047 = vmatpush.msra.mxu0 0.0
    %1048 = vmatpush.msra.mxu0 0.0
    %1049 = vmatpush.msra.mxu0 0.0
    %1050 = vmatpush.msra.mxu0 0.0
    %1051 = vmatpush.msra.mxu0 0.0
    %1052 = vmatpush.msra.mxu0 0.0
    %1053 = vmatpush.msra.mxu0 0.0
    %1054 = vmatpush.msra.mxu0 0.0
    %1055 = vmatpush.msra.mxu0 0.0
    %1056 = vmatpush.msra.mxu0 0.0
    %1057 = vmatpush.msra.mxu0 0.0
    %1058 = vmatpush.msra.mxu0 0.0
    %1059 = vmatpush.msra.mxu0 0.0
    %1060 = vmatpush.msra.mxu0 0.0
    %1061 = vmatpush.msra.mxu0 %v298
    %1062 = vmatmul.f32.gmra.mxu0 %v1044
    %v1063 = vpop.f32.mrf.mxu0
    %v1064 = vadd.f32 0.0, %v1063
    %1065 = vdwg.mxu0
    %1066 = vrot.lane.b32.xlu0 %v162, 112
    %v1067 = vpop.permute.xlu0 %1066
    %1068 = vrot.lane.b32.xlu0 %v162, 80
    %v1069 = vpop.permute.xlu0 %1068
    %v1070 = vsel %vm170, %v1067, 0
    %v1072 = vsel %vm170, %v1069, 0
    %1074 = vmatpush.xpose.msra.mxu0 0.0
    %1075 = vmatpush.xpose.msra.mxu0 0.0
    %1076 = vmatpush.xpose.msra.mxu0 0.0
    %1077 = vmatpush.xpose.msra.mxu0 0.0
    %1078 = vmatpush.xpose.msra.mxu0 0.0
    %1079 = vmatpush.xpose.msra.mxu0 0.0
    %1080 = vmatpush.xpose.msra.mxu0 0.0
    %1081 = vmatpush.xpose.msra.mxu0 0.0
    %1082 = vmatpush.xpose.msra.mxu0 0.0
    %1083 = vmatpush.xpose.msra.mxu0 0.0
    %1084 = vmatpush.xpose.msra.mxu0 0.0
    %1085 = vmatpush.xpose.msra.mxu0 0.0
    %1086 = vmatpush.xpose.msra.mxu0 0.0
    %1087 = vmatpush.xpose.msra.mxu0 0.0
    %1088 = vmatpush.xpose.msra.mxu0 0.0
    %1089 = vmatpush.xpose.msra.mxu0 %v1072
    %1090 = vmatmul.f32.gmra.mxu0 %v1070
    %v1091 = vpop.f32.mrf.mxu0
    %v1092 = vadd.f32 0.0, %v1091
    %1093 = vdwg.mxu0
    %v1094 = vsel %vm170, %v1092, -inf
    %1095 = vmax.xlane.f32.xlu0 %v1094
    %v1096 = vpop.xlane.xlu0 %1095
    %v1097 = vsub.f32 %v1092, %v1096
    %v1098 = vmul.f32 %v1097, 1.442695
    %v1099 = vpow.pop %v1098
    %v1100 = vsel %vm170, %v1099, 0.0
    %1101 = vadd.xlane.f32.xlu0 %v1100
    %v1102 = vpop.xlane.xlu0 %1101
    %v1103 = vrcp.pop %v1102
    %v1104 = vmul.f32 %v1102, %v1103
    %v1105 = vsub.f32 1.0, %v1104
    %v1106 = vmul.f32 %v1103, %v1105
    %v1107 = vadd.f32 %v1103, %v1106
    %vm1108 = vweird.f32 %v1102
    %vm1109 = vweird.f32 %v1103
    %vm1110 = vmor %vm1108, %vm1109
    %v1111 = vsel %vm1110, %v1103, %v1107
    %v1112 = vand.u32 2147483647, %v1102
    %vm1113 = vcmp.eq.f32.partialorder %v1112, 8.507059e+37
    %v1114 = vand.u32 %v1102, 2147483648
    %v1115 = vor.u32 1.1754944e-38, %v1114
    %v1116 = vsel %vm1113, %v1115, %v1111
    %v1117 = vmul.f32 %v1099, %v1116
    %v1119 = vsel %vm170, %v1117, 0
    %1121 = vmatpush.msra.mxu0 0.0
    %1122 = vmatpush.msra.mxu0 0.0
    %1123 = vmatpush.msra.mxu0 0.0
    %1124 = vmatpush.msra.mxu0 0.0
    %1125 = vmatpush.msra.mxu0 0.0
    %1126 = vmatpush.msra.mxu0 0.0
    %1127 = vmatpush.msra.mxu0 0.0
    %1128 = vmatpush.msra.mxu0 0.0
    %1129 = vmatpush.msra.mxu0 0.0
    %1130 = vmatpush.msra.mxu0 0.0
    %1131 = vmatpush.msra.mxu0 0.0
    %1132 = vmatpush.msra.mxu0 0.0
    %1133 = vmatpush.msra.mxu0 0.0
    %1134 = vmatpush.msra.mxu0 0.0
    %1135 = vmatpush.msra.mxu0 0.0
    %1136 = vmatpush.msra.mxu0 %v376
    %1137 = vmatmul.f32.gmra.mxu0 %v1119
    %v1138 = vpop.f32.mrf.mxu0
    %v1139 = vadd.f32 0.0, %v1138
    %1140 = vdwg.mxu0
    %1141 = vrot.lane.b32.xlu0 %v162, 104
    %v1142 = vpop.permute.xlu0 %1141
    %1143 = vrot.lane.b32.xlu0 %v162, 72
    %v1144 = vpop.permute.xlu0 %1143
    %v1145 = vsel %vm170, %v1142, 0
    %v1147 = vsel %vm170, %v1144, 0
    %1149 = vmatpush.xpose.msra.mxu0 0.0
    %1150 = vmatpush.xpose.msra.mxu0 0.0
    %1151 = vmatpush.xpose.msra.mxu0 0.0
    %1152 = vmatpush.xpose.msra.mxu0 0.0
    %1153 = vmatpush.xpose.msra.mxu0 0.0
    %1154 = vmatpush.xpose.msra.mxu0 0.0
    %1155 = vmatpush.xpose.msra.mxu0 0.0
    %1156 = vmatpush.xpose.msra.mxu0 0.0
    %1157 = vmatpush.xpose.msra.mxu0 0.0
    %1158 = vmatpush.xpose.msra.mxu0 0.0
    %1159 = vmatpush.xpose.msra.mxu0 0.0
    %1160 = vmatpush.xpose.msra.mxu0 0.0
    %1161 = vmatpush.xpose.msra.mxu0 0.0
    %1162 = vmatpush.xpose.msra.mxu0 0.0
    %1163 = vmatpush.xpose.msra.mxu0 0.0
    %1164 = vmatpush.xpose.msra.mxu0 %v1147
    %1165 = vmatmul.f32.gmra.mxu0 %v1145
    %v1166 = vpop.f32.mrf.mxu0
    %v1167 = vadd.f32 0.0, %v1166
    %1168 = vdwg.mxu0
    %v1169 = vsel %vm170, %v1167, -inf
    %1170 = vmax.xlane.f32.xlu0 %v1169
    %v1171 = vpop.xlane.xlu0 %1170
    %v1172 = vsub.f32 %v1167, %v1171
    %v1173 = vmul.f32 %v1172, 1.442695
    %v1174 = vpow.pop %v1173
    %v1175 = vsel %vm170, %v1174, 0.0
    %1176 = vadd.xlane.f32.xlu0 %v1175
    %v1177 = vpop.xlane.xlu0 %1176
    %v1178 = vrcp.pop %v1177
    %v1179 = vmul.f32 %v1177, %v1178
    %v1180 = vsub.f32 1.0, %v1179
    %v1181 = vmul.f32 %v1178, %v1180
    %v1182 = vadd.f32 %v1178, %v1181
    %vm1183 = vweird.f32 %v1177
    %vm1184 = vweird.f32 %v1178
    %vm1185 = vmor %vm1183, %vm1184
    %v1186 = vsel %vm1185, %v1178, %v1182
    %v1187 = vand.u32 2147483647, %v1177
    %vm1188 = vcmp.eq.f32.partialorder %v1187, 8.507059e+37
    %v1189 = vand.u32 %v1177, 2147483648
    %v1190 = vor.u32 1.1754944e-38, %v1189
    %v1191 = vsel %vm1188, %v1190, %v1186
    %v1192 = vmul.f32 %v1174, %v1191
    %v1194 = vsel %vm170, %v1192, 0
    %1196 = vmatpush.msra.mxu0 0.0
    %1197 = vmatpush.msra.mxu0 0.0
    %1198 = vmatpush.msra.mxu0 0.0
    %1199 = vmatpush.msra.mxu0 0.0
    %1200 = vmatpush.msra.mxu0 0.0
    %1201 = vmatpush.msra.mxu0 0.0
    %1202 = vmatpush.msra.mxu0 0.0
    %1203 = vmatpush.msra.mxu0 0.0
    %1204 = vmatpush.msra.mxu0 0.0
    %1205 = vmatpush.msra.mxu0 0.0
    %1206 = vmatpush.msra.mxu0 0.0
    %1207 = vmatpush.msra.mxu0 0.0
    %1208 = vmatpush.msra.mxu0 0.0
    %1209 = vmatpush.msra.mxu0 0.0
    %1210 = vmatpush.msra.mxu0 0.0
    %1211 = vmatpush.msra.mxu0 %v454
    %1212 = vmatmul.f32.gmra.mxu0 %v1194
    %v1213 = vpop.f32.mrf.mxu0
    %v1214 = vadd.f32 0.0, %v1213
    %1215 = vdwg.mxu0
    %1217 = vrot.lane.b32.xlu0 %v1064, 8
    %v1218 = vpop.permute.xlu0 %1217
    %1221 = vrot.lane.b32.xlu0 %v1139, 16
    %v1222 = vpop.permute.xlu0 %1221
    %1225 = vrot.lane.b32.xlu0 %v1214, 24
    %v1226 = vpop.permute.xlu0 %1225
    %v1228 = vsel %vm170, %v989, %v1218
    %v1229 = vsel %vm492, %v1228, %v1222
    %v1230 = vsel %vm494, %v1229, %v1226
    %1232 = vrot.lane.b32.xlu0 %v165, 96
    %v1233 = vpop.permute.xlu0 %1232
    %v1234 = vsel %vm170, %v165, 0
    %v1236 = vsel %vm170, %v1233, 0
    %1238 = vmatpush.xpose.msra.mxu0 0.0
    %1239 = vmatpush.xpose.msra.mxu0 0.0
    %1240 = vmatpush.xpose.msra.mxu0 0.0
    %1241 = vmatpush.xpose.msra.mxu0 0.0
    %1242 = vmatpush.xpose.msra.mxu0 0.0
    %1243 = vmatpush.xpose.msra.mxu0 0.0
    %1244 = vmatpush.xpose.msra.mxu0 0.0
    %1245 = vmatpush.xpose.msra.mxu0 0.0
    %1246 = vmatpush.xpose.msra.mxu0 0.0
    %1247 = vmatpush.xpose.msra.mxu0 0.0
    %1248 = vmatpush.xpose.msra.mxu0 0.0
    %1249 = vmatpush.xpose.msra.mxu0 0.0
    %1250 = vmatpush.xpose.msra.mxu0 0.0
    %1251 = vmatpush.xpose.msra.mxu0 0.0
    %1252 = vmatpush.xpose.msra.mxu0 0.0
    %1253 = vmatpush.xpose.msra.mxu0 %v1236
    %1254 = vmatmul.f32.gmra.mxu0 %v1234
    %v1255 = vpop.f32.mrf.mxu0
    %v1256 = vadd.f32 0.0, %v1255
    %1257 = vdwg.mxu0
    %v1258 = vsel %vm170, %v1256, -inf
    %1259 = vmax.xlane.f32.xlu0 %v1258
    %v1260 = vpop.xlane.xlu0 %1259
    %v1261 = vsub.f32 %v1256, %v1260
    %v1262 = vmul.f32 %v1261, 1.442695
    %v1263 = vpow.pop %v1262
    %v1264 = vsel %vm170, %v1263, 0.0
    %1265 = vadd.xlane.f32.xlu0 %v1264
    %v1266 = vpop.xlane.xlu0 %1265
    %v1267 = vrcp.pop %v1266
    %v1268 = vmul.f32 %v1266, %v1267
    %v1269 = vsub.f32 1.0, %v1268
    %v1270 = vmul.f32 %v1267, %v1269
    %v1271 = vadd.f32 %v1267, %v1270
    %vm1272 = vweird.f32 %v1266
    %vm1273 = vweird.f32 %v1267
    %vm1274 = vmor %vm1272, %vm1273
    %v1275 = vsel %vm1274, %v1267, %v1271
    %v1276 = vand.u32 2147483647, %v1266
    %vm1277 = vcmp.eq.f32.partialorder %v1276, 8.507059e+37
    %v1278 = vand.u32 %v1266, 2147483648
    %v1279 = vor.u32 1.1754944e-38, %v1278
    %v1280 = vsel %vm1277, %v1279, %v1275
    %v1281 = vmul.f32 %v1263, %v1280
    %v1283 = vsel %vm170, %v1281, 0
    %1285 = vmatpush.msra.mxu0 0.0
    %1286 = vmatpush.msra.mxu0 0.0
    %1287 = vmatpush.msra.mxu0 0.0
    %1288 = vmatpush.msra.mxu0 0.0
    %1289 = vmatpush.msra.mxu0 0.0
    %1290 = vmatpush.msra.mxu0 0.0
    %1291 = vmatpush.msra.mxu0 0.0
    %1292 = vmatpush.msra.mxu0 0.0
    %1293 = vmatpush.msra.mxu0 0.0
    %1294 = vmatpush.msra.mxu0 0.0
    %1295 = vmatpush.msra.mxu0 0.0
    %1296 = vmatpush.msra.mxu0 0.0
    %1297 = vmatpush.msra.mxu0 0.0
    %1298 = vmatpush.msra.mxu0 0.0
    %1299 = vmatpush.msra.mxu0 0.0
    %1300 = vmatpush.msra.mxu0 %v548
    %1301 = vmatmul.f32.gmra.mxu0 %v1283
    %v1302 = vpop.f32.mrf.mxu0
    %v1303 = vadd.f32 0.0, %v1302
    %1304 = vdwg.mxu0
    %1305 = vrot.lane.b32.xlu0 %v165, 120
    %v1306 = vpop.permute.xlu0 %1305
    %1307 = vrot.lane.b32.xlu0 %v165, 88
    %v1308 = vpop.permute.xlu0 %1307
    %v1309 = vsel %vm170, %v1306, 0
    %v1311 = vsel %vm170, %v1308, 0
    %1313 = vmatpush.xpose.msra.mxu0 0.0
    %1314 = vmatpush.xpose.msra.mxu0 0.0
    %1315 = vmatpush.xpose.msra.mxu0 0.0
    %1316 = vmatpush.xpose.msra.mxu0 0.0
    %1317 = vmatpush.xpose.msra.mxu0 0.0
    %1318 = vmatpush.xpose.msra.mxu0 0.0
    %1319 = vmatpush.xpose.msra.mxu0 0.0
    %1320 = vmatpush.xpose.msra.mxu0 0.0
    %1321 = vmatpush.xpose.msra.mxu0 0.0
    %1322 = vmatpush.xpose.msra.mxu0 0.0
    %1323 = vmatpush.xpose.msra.mxu0 0.0
    %1324 = vmatpush.xpose.msra.mxu0 0.0
    %1325 = vmatpush.xpose.msra.mxu0 0.0
    %1326 = vmatpush.xpose.msra.mxu0 0.0
    %1327 = vmatpush.xpose.msra.mxu0 0.0
    %1328 = vmatpush.xpose.msra.mxu0 %v1311
    %1329 = vmatmul.f32.gmra.mxu0 %v1309
    %v1330 = vpop.f32.mrf.mxu0
    %v1331 = vadd.f32 0.0, %v1330
    %1332 = vdwg.mxu0
    %v1333 = vsel %vm170, %v1331, -inf
    %1334 = vmax.xlane.f32.xlu0 %v1333
    %v1335 = vpop.xlane.xlu0 %1334
    %v1336 = vsub.f32 %v1331, %v1335
    %v1337 = vmul.f32 %v1336, 1.442695
    %v1338 = vpow.pop %v1337
    %v1339 = vsel %vm170, %v1338, 0.0
    %1340 = vadd.xlane.f32.xlu0 %v1339
    %v1341 = vpop.xlane.xlu0 %1340
    %v1342 = vrcp.pop %v1341
    %v1343 = vmul.f32 %v1341, %v1342
    %v1344 = vsub.f32 1.0, %v1343
    %v1345 = vmul.f32 %v1342, %v1344
    %v1346 = vadd.f32 %v1342, %v1345
    %vm1347 = vweird.f32 %v1341
    %vm1348 = vweird.f32 %v1342
    %vm1349 = vmor %vm1347, %vm1348
    %v1350 = vsel %vm1349, %v1342, %v1346
    %v1351 = vand.u32 2147483647, %v1341
    %vm1352 = vcmp.eq.f32.partialorder %v1351, 8.507059e+37
    %v1353 = vand.u32 %v1341, 2147483648
    %v1354 = vor.u32 1.1754944e-38, %v1353
    %v1355 = vsel %vm1352, %v1354, %v1350
    %v1356 = vmul.f32 %v1338, %v1355
    %v1358 = vsel %vm170, %v1356, 0
    %1360 = vmatpush.msra.mxu0 0.0
    %1361 = vmatpush.msra.mxu0 0.0
    %1362 = vmatpush.msra.mxu0 0.0
    %1363 = vmatpush.msra.mxu0 0.0
    %1364 = vmatpush.msra.mxu0 0.0
    %1365 = vmatpush.msra.mxu0 0.0
    %1366 = vmatpush.msra.mxu0 0.0
    %1367 = vmatpush.msra.mxu0 0.0
    %1368 = vmatpush.msra.mxu0 0.0
    %1369 = vmatpush.msra.mxu0 0.0
    %1370 = vmatpush.msra.mxu0 0.0
    %1371 = vmatpush.msra.mxu0 0.0
    %1372 = vmatpush.msra.mxu0 0.0
    %1373 = vmatpush.msra.mxu0 0.0
    %1374 = vmatpush.msra.mxu0 0.0
    %1375 = vmatpush.msra.mxu0 %v626
    %1376 = vmatmul.f32.gmra.mxu0 %v1358
    %v1377 = vpop.f32.mrf.mxu0
    %v1378 = vadd.f32 0.0, %v1377
    %1379 = vdwg.mxu0
    %1380 = vrot.lane.b32.xlu0 %v165, 112
    %v1381 = vpop.permute.xlu0 %1380
    %1382 = vrot.lane.b32.xlu0 %v165, 80
    %v1383 = vpop.permute.xlu0 %1382
    %v1384 = vsel %vm170, %v1381, 0
    %v1386 = vsel %vm170, %v1383, 0
    %1388 = vmatpush.xpose.msra.mxu0 0.0
    %1389 = vmatpush.xpose.msra.mxu0 0.0
    %1390 = vmatpush.xpose.msra.mxu0 0.0
    %1391 = vmatpush.xpose.msra.mxu0 0.0
    %1392 = vmatpush.xpose.msra.mxu0 0.0
    %1393 = vmatpush.xpose.msra.mxu0 0.0
    %1394 = vmatpush.xpose.msra.mxu0 0.0
    %1395 = vmatpush.xpose.msra.mxu0 0.0
    %1396 = vmatpush.xpose.msra.mxu0 0.0
    %1397 = vmatpush.xpose.msra.mxu0 0.0
    %1398 = vmatpush.xpose.msra.mxu0 0.0
    %1399 = vmatpush.xpose.msra.mxu0 0.0
    %1400 = vmatpush.xpose.msra.mxu0 0.0
    %1401 = vmatpush.xpose.msra.mxu0 0.0
    %1402 = vmatpush.xpose.msra.mxu0 0.0
    %1403 = vmatpush.xpose.msra.mxu0 %v1386
    %1404 = vmatmul.f32.gmra.mxu0 %v1384
    %v1405 = vpop.f32.mrf.mxu0
    %v1406 = vadd.f32 0.0, %v1405
    %1407 = vdwg.mxu0
    %v1408 = vsel %vm170, %v1406, -inf
    %1409 = vmax.xlane.f32.xlu0 %v1408
    %v1410 = vpop.xlane.xlu0 %1409
    %v1411 = vsub.f32 %v1406, %v1410
    %v1412 = vmul.f32 %v1411, 1.442695
    %v1413 = vpow.pop %v1412
    %v1414 = vsel %vm170, %v1413, 0.0
    %1415 = vadd.xlane.f32.xlu0 %v1414
    %v1416 = vpop.xlane.xlu0 %1415
    %v1417 = vrcp.pop %v1416
    %v1418 = vmul.f32 %v1416, %v1417
    %v1419 = vsub.f32 1.0, %v1418
    %v1420 = vmul.f32 %v1417, %v1419
    %v1421 = vadd.f32 %v1417, %v1420
    %vm1422 = vweird.f32 %v1416
    %vm1423 = vweird.f32 %v1417
    %vm1424 = vmor %vm1422, %vm1423
    %v1425 = vsel %vm1424, %v1417, %v1421
    %v1426 = vand.u32 2147483647, %v1416
    %vm1427 = vcmp.eq.f32.partialorder %v1426, 8.507059e+37
    %v1428 = vand.u32 %v1416, 2147483648
    %v1429 = vor.u32 1.1754944e-38, %v1428
    %v1430 = vsel %vm1427, %v1429, %v1425
    %v1431 = vmul.f32 %v1413, %v1430
    %v1433 = vsel %vm170, %v1431, 0
    %1435 = vmatpush.msra.mxu0 0.0
    %1436 = vmatpush.msra.mxu0 0.0
    %1437 = vmatpush.msra.mxu0 0.0
    %1438 = vmatpush.msra.mxu0 0.0
    %1439 = vmatpush.msra.mxu0 0.0
    %1440 = vmatpush.msra.mxu0 0.0
    %1441 = vmatpush.msra.mxu0 0.0
    %1442 = vmatpush.msra.mxu0 0.0
    %1443 = vmatpush.msra.mxu0 0.0
    %1444 = vmatpush.msra.mxu0 0.0
    %1445 = vmatpush.msra.mxu0 0.0
    %1446 = vmatpush.msra.mxu0 0.0
    %1447 = vmatpush.msra.mxu0 0.0
    %1448 = vmatpush.msra.mxu0 0.0
    %1449 = vmatpush.msra.mxu0 0.0
    %1450 = vmatpush.msra.mxu0 %v704
    %1451 = vmatmul.f32.gmra.mxu0 %v1433
    %v1452 = vpop.f32.mrf.mxu0
    %v1453 = vadd.f32 0.0, %v1452
    %1454 = vdwg.mxu0
    %1455 = vrot.lane.b32.xlu0 %v165, 104
    %v1456 = vpop.permute.xlu0 %1455
    %1457 = vrot.lane.b32.xlu0 %v165, 72
    %v1458 = vpop.permute.xlu0 %1457
    %v1459 = vsel %vm170, %v1456, 0
    %v1461 = vsel %vm170, %v1458, 0
    %1463 = vmatpush.xpose.msra.mxu0 0.0
    %1464 = vmatpush.xpose.msra.mxu0 0.0
    %1465 = vmatpush.xpose.msra.mxu0 0.0
    %1466 = vmatpush.xpose.msra.mxu0 0.0
    %1467 = vmatpush.xpose.msra.mxu0 0.0
    %1468 = vmatpush.xpose.msra.mxu0 0.0
    %1469 = vmatpush.xpose.msra.mxu0 0.0
    %1470 = vmatpush.xpose.msra.mxu0 0.0
    %1471 = vmatpush.xpose.msra.mxu0 0.0
    %1472 = vmatpush.xpose.msra.mxu0 0.0
    %1473 = vmatpush.xpose.msra.mxu0 0.0
    %1474 = vmatpush.xpose.msra.mxu0 0.0
    %1475 = vmatpush.xpose.msra.mxu0 0.0
    %1476 = vmatpush.xpose.msra.mxu0 0.0
    %1477 = vmatpush.xpose.msra.mxu0 0.0
    %1478 = vmatpush.xpose.msra.mxu0 %v1461
    %1479 = vmatmul.f32.gmra.mxu0 %v1459
    %v1480 = vpop.f32.mrf.mxu0
    %v1481 = vadd.f32 0.0, %v1480
    %1482 = vdwg.mxu0
    %v1483 = vsel %vm170, %v1481, -inf
    %1484 = vmax.xlane.f32.xlu0 %v1483
    %v1485 = vpop.xlane.xlu0 %1484
    %v1486 = vsub.f32 %v1481, %v1485
    %v1487 = vmul.f32 %v1486, 1.442695
    %v1488 = vpow.pop %v1487
    %v1489 = vsel %vm170, %v1488, 0.0
    %1490 = vadd.xlane.f32.xlu0 %v1489
    %v1491 = vpop.xlane.xlu0 %1490
    %v1492 = vrcp.pop %v1491
    %v1493 = vmul.f32 %v1491, %v1492
    %v1494 = vsub.f32 1.0, %v1493
    %v1495 = vmul.f32 %v1492, %v1494
    %v1496 = vadd.f32 %v1492, %v1495
    %vm1497 = vweird.f32 %v1491
    %vm1498 = vweird.f32 %v1492
    %vm1499 = vmor %vm1497, %vm1498
    %v1500 = vsel %vm1499, %v1492, %v1496
    %v1501 = vand.u32 2147483647, %v1491
    %vm1502 = vcmp.eq.f32.partialorder %v1501, 8.507059e+37
    %v1503 = vand.u32 %v1491, 2147483648
    %v1504 = vor.u32 1.1754944e-38, %v1503
    %v1505 = vsel %vm1502, %v1504, %v1500
    %v1506 = vmul.f32 %v1488, %v1505
    %v1508 = vsel %vm170, %v1506, 0
    %1510 = vmatpush.msra.mxu0 0.0
    %1511 = vmatpush.msra.mxu0 0.0
    %1512 = vmatpush.msra.mxu0 0.0
    %1513 = vmatpush.msra.mxu0 0.0
    %1514 = vmatpush.msra.mxu0 0.0
    %1515 = vmatpush.msra.mxu0 0.0
    %1516 = vmatpush.msra.mxu0 0.0
    %1517 = vmatpush.msra.mxu0 0.0
    %1518 = vmatpush.msra.mxu0 0.0
    %1519 = vmatpush.msra.mxu0 0.0
    %1520 = vmatpush.msra.mxu0 0.0
    %1521 = vmatpush.msra.mxu0 0.0
    %1522 = vmatpush.msra.mxu0 0.0
    %1523 = vmatpush.msra.mxu0 0.0
    %1524 = vmatpush.msra.mxu0 0.0
    %1525 = vmatpush.msra.mxu0 %v782
    %1526 = vmatmul.f32.gmra.mxu0 %v1508
    %v1527 = vpop.f32.mrf.mxu0
    %v1528 = vadd.f32 0.0, %v1527
    %1529 = vdwg.mxu0
    %1531 = vrot.lane.b32.xlu0 %v1378, 8
    %v1532 = vpop.permute.xlu0 %1531
    %1535 = vrot.lane.b32.xlu0 %v1453, 16
    %v1536 = vpop.permute.xlu0 %1535
    %1539 = vrot.lane.b32.xlu0 %v1528, 24
    %v1540 = vpop.permute.xlu0 %1539
    %v1542 = vsel %vm170, %v1303, %v1532
    %v1543 = vsel %vm492, %v1542, %v1536
    %v1544 = vsel %vm494, %v1543, %v1540
    %v1546 = vsel %vm108, %v1230, 0
    %v1549 = vsel %vm108, %v1544, 0
    %1551 = vmatpush.msra.mxu0 0.0
    %1552 = vmatpush.msra.mxu0 0.0
    %1553 = vmatpush.msra.mxu0 0.0
    %1554 = vmatpush.msra.mxu0 0.0
    %1555 = vmatpush.msra.mxu0 0.0
    %1556 = vmatpush.msra.mxu0 0.0
    %1557 = vmatpush.msra.mxu0 0.0
    %1558 = vmatpush.msra.mxu0 0.0
    %1559 = vmatpush.msra.mxu0 0.0
    %1560 = vmatpush.msra.mxu0 0.0
    %1561 = vmatpush.msra.mxu0 0.0
    %1562 = vmatpush.msra.mxu0 0.0
    %1563 = vmatpush.msra.mxu0 %v98
    %1564 = vmatpush.msra.mxu0 %v97
    %1565 = vmatpush.msra.mxu0 %v96
    %1566 = vmatpush.msra.mxu0 %v95
    %1567 = vmatmul.f32.gmra.mxu0 %v1546
    %v1568 = vpop.f32.mrf.mxu0
    %v1569 = vadd.f32 %v823, %v1568
    %1570 = vmatmul.f32.gmra.mxu0 %v1549
    %v1571 = vpop.f32.mrf.mxu0
    %v1572 = vadd.f32 %v823, %v1571
    %1573 = vdwg.mxu0
    %v1574 = vadd.f32 %v1569, %v915
    %v1575 = vadd.f32 %v1572, %v916
    %v1576 = vsel %vm108, %v1574, 0.0
    %1577 = vadd.xlane.f32.xlu0 %v1576
    %v1578 = vpop.xlane.xlu0 %1577
    %v1579 = vsel %vm108, %v1575, 0.0
    %1580 = vadd.xlane.f32.xlu0 %v1579
    %v1581 = vpop.xlane.xlu0 %1580
    %v1582 = vmul.f32 %v1578, %v868
    %v1583 = vmul.f32 %v1581, %v868
    %v1584 = vsub.f32 %v1574, %v1582
    %v1585 = vsub.f32 %v1575, %v1583
    %v1586 = vmul.f32 %v1584, %v1584
    %v1587 = vmul.f32 %v1585, %v1585
    %v1588 = vsel %vm108, %v1586, 0.0
    %1589 = vadd.xlane.f32.xlu0 %v1588
    %v1590 = vpop.xlane.xlu0 %1589
    %v1591 = vsel %vm108, %v1587, 0.0
    %1592 = vadd.xlane.f32.xlu0 %v1591
    %v1593 = vpop.xlane.xlu0 %1592
    %v1594 = vmul.f32 %v1590, %v868
    %v1595 = vmul.f32 %v1593, %v868
    %v1596 = vadd.f32 %v1594, 1e-05
    %v1597 = vadd.f32 %v1595, 1e-05
    %v1598 = vrsqrt.pop %v1596
    %v1599 = vmul.f32 %v1598, %v1596
    %v1600 = vmul.f32 %v1599, %v1598
    %v1601 = vmul.f32 0.5, %v1600
    %v1602 = vsub.f32 1.5, %v1601
    %v1603 = vmul.f32 %v1598, %v1602
    %vm1604 = vweird.f32 %v1596
    %vm1605 = vweird.f32 %v1598
    %vm1606 = vmor %vm1604, %vm1605
    %v1607 = vsel %vm1606, %v1598, %v1603
    %v1608 = vrsqrt.pop %v1597
    %v1609 = vmul.f32 %v1608, %v1597
    %v1610 = vmul.f32 %v1609, %v1608
    %v1611 = vmul.f32 0.5, %v1610
    %v1612 = vsub.f32 1.5, %v1611
    %v1613 = vmul.f32 %v1608, %v1612
    %vm1614 = vweird.f32 %v1597
    %vm1615 = vweird.f32 %v1608
    %vm1616 = vmor %vm1614, %vm1615
    %v1617 = vsel %vm1616, %v1608, %v1613
    %v1618 = vmul.f32 %v1584, %v1607
    %v1619 = vmul.f32 %v1585, %v1617
    %v1620 = vmul.f32 %v1618, %v908
    %v1621 = vmul.f32 %v1619, %v908
    %v1622 = vadd.f32 %v1620, %v913
    %v1623 = vadd.f32 %v1621, %v913
    %v1624 = vld [vmem:[%s9] sm:$0xff]
    %v1625 = vld [vmem:[%s9 + $0x8] sm:$0xff]
    %v1626 = vld [vmem:[%s9 + $0x10] sm:$0xff]
    %v1627 = vld [vmem:[%s9 + $0x18] sm:$0xff]
    %v1628 = vld [vmem:[#allocation5] sm:$0x1]
    %v1630 = vperm.slane %v1628, 0
    %v1633 = vsel %vm108, %v1622, 0
    %v1636 = vsel %vm108, %v1623, 0
    %1638 = vmatpush.msra.mxu0 0.0
    %1639 = vmatpush.msra.mxu0 0.0
    %1640 = vmatpush.msra.mxu0 0.0
    %1641 = vmatpush.msra.mxu0 0.0
    %1642 = vmatpush.msra.mxu0 0.0
    %1643 = vmatpush.msra.mxu0 0.0
    %1644 = vmatpush.msra.mxu0 0.0
    %1645 = vmatpush.msra.mxu0 0.0
    %1646 = vmatpush.msra.mxu0 0.0
    %1647 = vmatpush.msra.mxu0 0.0
    %1648 = vmatpush.msra.mxu0 0.0
    %1649 = vmatpush.msra.mxu0 0.0
    %1650 = vmatpush.msra.mxu0 %v1627
    %1651 = vmatpush.msra.mxu0 %v1626
    %1652 = vmatpush.msra.mxu0 %v1625
    %1653 = vmatpush.msra.mxu0 %v1624
    %1654 = vmatmul.f32.gmra.mxu0 %v1633
    %v1655 = vpop.f32.mrf.mxu0
    %v1656 = vadd.f32 %v1630, %v1655
    %1657 = vmatmul.f32.gmra.mxu0 %v1636
    %v1658 = vpop.f32.mrf.mxu0
    %v1659 = vadd.f32 %v1630, %v1658
    %1660 = vdwg.mxu0
    %v1661 = vmax.f32 %v1656, 0.0
    %v1662 = vmax.f32 %v1659, 0.0
    %v1663 = vld [vmem:[%s11] sm:$0xff]
    %v1664 = vld [vmem:[%s11 + $0x8] sm:$0xff]
    %v1665 = vld [vmem:[%s11 + $0x10] sm:$0xff]
    %v1666 = vld [vmem:[%s11 + $0x18] sm:$0xff]
    %v1667 = vld [vmem:[%s11 + $0x20] sm:$0xff]
    %v1668 = vld [vmem:[%s11 + $0x28] sm:$0xff]
    %v1669 = vld [vmem:[%s11 + $0x30] sm:$0xff]
    %v1670 = vld [vmem:[%s11 + $0x38] sm:$0xff]
    %v1671 = vld [vmem:[#allocation7] sm:$0x1]
    %v1673 = vperm.slane %v1671, 0
    %vm1675 = vcmask 523264
    %v1677 = vsel %vm1675, %v1661, 0
    %v1680 = vsel %vm1675, %v1662, 0
    %1682 = vmatpush.msra.mxu0 0.0
    %1683 = vmatpush.msra.mxu0 0.0
    %1684 = vmatpush.msra.mxu0 0.0
    %1685 = vmatpush.msra.mxu0 0.0
    %1686 = vmatpush.msra.mxu0 0.0
    %1687 = vmatpush.msra.mxu0 0.0
    %1688 = vmatpush.msra.mxu0 0.0
    %1689 = vmatpush.msra.mxu0 0.0
    %1690 = vmatpush.msra.mxu0 %v1670
    %1691 = vmatpush.msra.mxu0 %v1669
    %1692 = vmatpush.msra.mxu0 %v1668
    %1693 = vmatpush.msra.mxu0 %v1667
    %1694 = vmatpush.msra.mxu0 %v1666
    %1695 = vmatpush.msra.mxu0 %v1665
    %1696 = vmatpush.msra.mxu0 %v1664
    %1697 = vmatpush.msra.mxu0 %v1663
    %1698 = vmatmul.f32.gmra.mxu0 %v1677
    %v1699 = vpop.f32.mrf.mxu0
    %v1700 = vadd.f32 %v1673, %v1699
    %1701 = vmatmul.f32.gmra.mxu0 %v1680
    %v1702 = vpop.f32.mrf.mxu0
    %v1703 = vadd.f32 %v1673, %v1702
    %1704 = vdwg.mxu0
    %v1705 = vadd.f32 %v1700, %v1622
    %v1706 = vadd.f32 %v1703, %v1623
    %v1707 = vsel %vm108, %v1705, 0.0
    %1708 = vadd.xlane.f32.xlu0 %v1707
    %v1709 = vpop.xlane.xlu0 %1708
    %v1710 = vsel %vm108, %v1706, 0.0
    %1711 = vadd.xlane.f32.xlu0 %v1710
    %v1712 = vpop.xlane.xlu0 %1711
    %v1713 = vmul.f32 %v1709, %v868
    %v1714 = vmul.f32 %v1712, %v868
    %v1715 = vsub.f32 %v1705, %v1713
    %v1716 = vsub.f32 %v1706, %v1714
    %v1717 = vmul.f32 %v1715, %v1715
    %v1718 = vmul.f32 %v1716, %v1716
    %v1719 = vsel %vm108, %v1717, 0.0
    %1720 = vadd.xlane.f32.xlu0 %v1719
    %v1721 = vpop.xlane.xlu0 %1720
    %v1722 = vsel %vm108, %v1718, 0.0
    %1723 = vadd.xlane.f32.xlu0 %v1722
    %v1724 = vpop.xlane.xlu0 %1723
    %v1725 = vmul.f32 %v1721, %v868
    %v1726 = vmul.f32 %v1724, %v868
    %v1727 = vadd.f32 %v1725, 1e-05
    %v1728 = vadd.f32 %v1726, 1e-05
    %v1729 = vrsqrt.pop %v1727
    %v1730 = vmul.f32 %v1729, %v1727
    %v1731 = vmul.f32 %v1730, %v1729
    %v1732 = vmul.f32 0.5, %v1731
    %v1733 = vsub.f32 1.5, %v1732
    %v1734 = vmul.f32 %v1729, %v1733
    %vm1735 = vweird.f32 %v1727
    %vm1736 = vweird.f32 %v1729
    %vm1737 = vmor %vm1735, %vm1736
    %v1738 = vsel %vm1737, %v1729, %v1734
    %v1739 = vrsqrt.pop %v1728
    %v1740 = vmul.f32 %v1739, %v1728
    %v1741 = vmul.f32 %v1740, %v1739
    %v1742 = vmul.f32 0.5, %v1741
    %v1743 = vsub.f32 1.5, %v1742
    %v1744 = vmul.f32 %v1739, %v1743
    %vm1745 = vweird.f32 %v1728
    %vm1746 = vweird.f32 %v1739
    %vm1747 = vmor %vm1745, %vm1746
    %v1748 = vsel %vm1747, %v1739, %v1744
    %v1749 = vmul.f32 %v1715, %v1738
    %v1750 = vmul.f32 %v1716, %v1748
    %v1751 = vmul.f32 %v1749, %v908
    %v1752 = vmul.f32 %v1750, %v908
    %v1753 = vadd.f32 %v1751, %v913
    %v1754 = vadd.f32 %v1752, %v913
    %1755 = vst.msk [vmem:[#allocation8] sm:$0xff] %vm108, %v1753
    %1756 = vst.msk [vmem:[#allocation8 + $0x8] sm:$0xff] %vm108, %v1754
    // Predicated region
    $region66: #{transformer_decoder.1} parent=1 // pred_check
      _
    $region67: #{transformer_decoder.1} parent=1 // pred_check_branch
      %1758 = sbr.rel (0) target = $region69
    $region68: #{transformer_decoder.1} parent=1 // pred_region
      %1760 = vsyncadd [#allocation4], 0
      %s1761 = sshll.u32 [#allocation8], 4
      %s1762 = int_to_ptr.vmem [resolvable:$true] %s1761
      %s1763 = sshll.u32 %s13, 4
      %s1764 = int_to_ptr.hbm [resolvable:$true] %s1763
      %1769 = dma.vmem_to_hbm [thread:$0]  %s1762, 256, %s1764, [#allocation4], 128, 128, 8
    $region69: #{transformer_decoder.1} parent=1 // pred_fallthru
      _
    // Predicated region
    $region70: #{transformer_decoder.1} parent=1 // pred_check
      _
    $region71: #{transformer_decoder.1} parent=1 // pred_check_branch
      %1771 = sbr.rel (0) target = $region73
    $region72: #{transformer_decoder.1} parent=1 // pred_region
      %1773 = dma.done [#allocation4], 256
    $region73: #{transformer_decoder.1} parent=1 // pred_fallthru
      _
    %1774 = vsyncpa [#allocation3], 1
    %1775 = vsyncpa [#allocation6], 1
    %1776 = vsyncpa [#allocation4], 1

</llo_original>
